<compile_context>
chip_gen: v6e
topology: v6e:2x2x1
jax: 0.10.0
libtpu: 0.0.40
codegen_flags: <defaults>
</compile_context>

<pallas_src>
import jax
import jax.numpy as jnp
from jax import lax
from jax.experimental import pallas as pl
from jax.experimental.pallas import tpu as pltpu


def rnn_encoder_kernel(tok_ref, p_ref, whh_ref, h_ref):
    """Shapes:
      tok_ref: (T*Bp,)  int32 SMEM  time-major token ids (padded batch rows hold token 0)
      p_ref:   (Vp, Hp) f32  VMEM  p[v] = emb[v] @ W_ih^T + b_ih + b_hh (zero-padded)
      whh_ref: (Hp, Hp) f32  VMEM  W_hh^T (zero-padded rows/cols)
      h_ref:   (Bp, Hp) f32  VMEM  output hidden state
    """
    Bp, Hp = h_ref.shape
    T = tok_ref.shape[0] // Bp

    def gather_pre(t):
        # nn.Embedding + i2h projection + both biases folded into a single row gather of p.
        base = t * Bp
        rows = [p_ref[pl.ds(tok_ref[base + b], 1), :] for b in range(Bp)]
        return jnp.concatenate(rows, axis=0)                       # (Bp, Hp)

    def step(t, h):
        pre_t = gather_pre(t)                                      # (Bp, Hp)
        hh = jnp.dot(h, whh_ref[...], preferred_element_type=jnp.float32)
        return jnp.tanh(pre_t + hh)

    h0 = jnp.zeros((Bp, Hp), jnp.float32)
    h_ref[...] = lax.fori_loop(0, T, step, h0, unroll=min(T, 8))   # partial unroll


def rnn_encoder_forward(x_onehot_btv, emb, w_ih, b_ih, w_hh, b_hh):
    """x_onehot_btv: (B, T, V) float32 one-hot. Returns final hidden (B, H)."""
    B, T, V = x_onehot_btv.shape
    H = w_hh.shape[0]

    Bp = max(8, ((B + 7) // 8) * 8)            # sublane-aligned batch
    Hp = max(128, ((H + 127) // 128) * 128)    # lane-aligned hidden
    Vp = max(8, ((V + 7) // 8) * 8)            # sublane-aligned vocab (gather table rows)

    # Recover token ids from the one-hot input (nn.Embedding on one-hot == index gather).
    tokens = jnp.argmax(x_onehot_btv, axis=-1).astype(jnp.int32)   # (B, T)
    tokens = jnp.transpose(tokens)                                 # (T, B) time-major
    tokens = jnp.pad(tokens, ((0, 0), (0, Bp - B)))                # padded rows -> token 0
    tokens = tokens.reshape(T * Bp)

    # Fused per-token lookup table: p[v] = emb[v] @ W_ih^T + b_ih + b_hh.
    p = (jnp.dot(emb, w_ih.T) + b_ih + b_hh).astype(jnp.float32)   # (V, H)
    p = jnp.pad(p, ((0, Vp - V), (0, Hp - H)))                     # (Vp, Hp)
    whh_t = jnp.pad(w_hh.T.astype(jnp.float32),
                    ((0, Hp - H), (0, Hp - H)))                    # (Hp, Hp)

    smem = pl.BlockSpec(memory_space=pltpu.MemorySpace.SMEM)
    vmem = pl.BlockSpec(memory_space=pltpu.MemorySpace.VMEM)

    # Scoped-VMEM limit sized to the actual resident buffers + headroom (v5e default is 16 MiB).
    needed_bytes = 4 * (Vp * Hp + Hp * Hp + Bp * Hp)
    vmem_limit = int(min(100 * 1024 * 1024, needed_bytes + (16 << 20)))

    h_pad = pl.pallas_call(
        rnn_encoder_kernel,
        out_shape=jax.ShapeDtypeStruct((Bp, Hp), jnp.float32),
        in_specs=[smem, vmem, vmem],
        out_specs=vmem,
        compiler_params=pltpu.CompilerParams(vmem_limit_bytes=vmem_limit),
    )(tokens, p, whh_t)

    return h_pad[:B, :H]


def rnn_encoder_reference(x_onehot_btv, emb, w_ih, b_ih, w_hh, b_hh):
    B, T, V = x_onehot_btv.shape
    H = w_hh.shape[0]
    h = jnp.zeros((B, H), jnp.float32)
    for t in range(T):
        e = x_onehot_btv[:, t] @ emb
        h = jnp.tanh(e @ w_ih.T + b_ih + h @ w_hh.T + b_hh)
    return h


if __name__ == "__main__":
    # Small deterministic setup.
    B, T = 2, 8              # batch, source_seq_length
    V = 16                   # source_vocab.vocab_size
    E = 32                   # embedding_dim
    H = 32                   # hidden_dim

    key = jax.random.PRNGKey(0)
    k_tok, k_emb, k_wih, k_bih, k_whh, k_bhh = jax.random.split(key, 6)

    # Input: one-hot encoded source sequence (B, T, V).
    tokens = jax.random.randint(k_tok, (B, T), 0, V)
    x_onehot = jax.nn.one_hot(tokens, V, dtype=jnp.float32)

    # Parameters (PyTorch-like init, deterministic).
    emb = jax.random.normal(k_emb, (V, E), jnp.float32)                   # nn.Embedding
    lim_i = 1.0 / jnp.sqrt(E)
    lim_h = 1.0 / jnp.sqrt(H)
    w_ih = jax.random.uniform(k_wih, (H, E), jnp.float32, -lim_i, lim_i)  # i2h.weight
    b_ih = jax.random.uniform(k_bih, (H,), jnp.float32, -lim_i, lim_i)    # i2h.bias
    w_hh = jax.random.uniform(k_whh, (H, H), jnp.float32, -lim_h, lim_h)  # h2h.weight
    b_hh = jax.random.uniform(k_bhh, (H,), jnp.float32, -lim_h, lim_h)    # h2h.bias

    hidden = rnn_encoder_forward(x_onehot, emb, w_ih, b_ih, w_hh, b_hh)
    hidden = jax.block_until_ready(hidden)

    ref = rnn_encoder_reference(x_onehot, emb, w_ih, b_ih, w_hh, b_hh)
    assert hidden.shape == (B, H)
    assert jnp.allclose(hidden, ref, atol=1e-5, rtol=1e-5), float(
        jnp.max(jnp.abs(hidden - ref)))

    print("KERNEL_OK")
</pallas_src>

<mosaic_0001>
module attributes {stable_mosaic.version = 11 : i64} {
  func.func @rnn_encoder_kernel(%arg0: memref<64xi32, #tpu.memory_space<smem>>, %arg1: memref<16x128xf32, #tpu.memory_space<vmem>>, %arg2: memref<128x128xf32, #tpu.memory_space<vmem>>, %arg3: memref<8x128xf32, #tpu.memory_space<vmem>>) attributes {dimension_semantics = [], scalar_prefetch = 0 : i64, scratch_operands = 0 : i64, tpu.core_type = #tpu.core_type<tc>} {
    %cst = arith.constant 0.000000e+00 : f32
    %0 = vector.broadcast %cst : f32 to vector<8x128xf32>
    %c0_i32 = arith.constant 0 : i32
    %c8_i32 = arith.constant 8 : i32
    %1 = arith.muli %c0_i32, %c8_i32 : i32
    %c0_i32_0 = arith.constant 0 : i32
    %2 = arith.addi %1, %c0_i32_0 : i32
    %3 = arith.index_cast %2 : i32 to index
    %4 = memref.load %arg0[%3] : memref<64xi32, #tpu.memory_space<smem>>
    %5 = arith.index_cast %4 : i32 to index
    %c0 = arith.constant 0 : index
    %6 = vector.load %arg1[%5, %c0] : memref<16x128xf32, #tpu.memory_space<vmem>>, vector<1x128xf32>
    %c1_i32 = arith.constant 1 : i32
    %7 = arith.addi %1, %c1_i32 : i32
    %8 = arith.index_cast %7 : i32 to index
    %9 = memref.load %arg0[%8] : memref<64xi32, #tpu.memory_space<smem>>
    %10 = arith.index_cast %9 : i32 to index
    %c0_1 = arith.constant 0 : index
    %11 = vector.load %arg1[%10, %c0_1] : memref<16x128xf32, #tpu.memory_space<vmem>>, vector<1x128xf32>
    %c2_i32 = arith.constant 2 : i32
    %12 = arith.addi %1, %c2_i32 : i32
    %13 = arith.index_cast %12 : i32 to index
    %14 = memref.load %arg0[%13] : memref<64xi32, #tpu.memory_space<smem>>
    %15 = arith.index_cast %14 : i32 to index
    %c0_2 = arith.constant 0 : index
    %16 = vector.load %arg1[%15, %c0_2] : memref<16x128xf32, #tpu.memory_space<vmem>>, vector<1x128xf32>
    %c3_i32 = arith.constant 3 : i32
    %17 = arith.addi %1, %c3_i32 : i32
    %18 = arith.index_cast %17 : i32 to index
    %19 = memref.load %arg0[%18] : memref<64xi32, #tpu.memory_space<smem>>
    %20 = arith.index_cast %19 : i32 to index
    %c0_3 = arith.constant 0 : index
    %21 = vector.load %arg1[%20, %c0_3] : memref<16x128xf32, #tpu.memory_space<vmem>>, vector<1x128xf32>
    %c4_i32 = arith.constant 4 : i32
    %22 = arith.addi %1, %c4_i32 : i32
    %23 = arith.index_cast %22 : i32 to index
    %24 = memref.load %arg0[%23] : memref<64xi32, #tpu.memory_space<smem>>
    %25 = arith.index_cast %24 : i32 to index
    %c0_4 = arith.constant 0 : index
    %26 = vector.load %arg1[%25, %c0_4] : memref<16x128xf32, #tpu.memory_space<vmem>>, vector<1x128xf32>
    %c5_i32 = arith.constant 5 : i32
    %27 = arith.addi %1, %c5_i32 : i32
    %28 = arith.index_cast %27 : i32 to index
    %29 = memref.load %arg0[%28] : memref<64xi32, #tpu.memory_space<smem>>
    %30 = arith.index_cast %29 : i32 to index
    %c0_5 = arith.constant 0 : index
    %31 = vector.load %arg1[%30, %c0_5] : memref<16x128xf32, #tpu.memory_space<vmem>>, vector<1x128xf32>
    %c6_i32 = arith.constant 6 : i32
    %32 = arith.addi %1, %c6_i32 : i32
    %33 = arith.index_cast %32 : i32 to index
    %34 = memref.load %arg0[%33] : memref<64xi32, #tpu.memory_space<smem>>
    %35 = arith.index_cast %34 : i32 to index
    %c0_6 = arith.constant 0 : index
    %36 = vector.load %arg1[%35, %c0_6] : memref<16x128xf32, #tpu.memory_space<vmem>>, vector<1x128xf32>
    %c7_i32 = arith.constant 7 : i32
    %37 = arith.addi %1, %c7_i32 : i32
    %38 = arith.index_cast %37 : i32 to index
    %39 = memref.load %arg0[%38] : memref<64xi32, #tpu.memory_space<smem>>
    %40 = arith.index_cast %39 : i32 to index
    %c0_7 = arith.constant 0 : index
    %41 = vector.load %arg1[%40, %c0_7] : memref<16x128xf32, #tpu.memory_space<vmem>>, vector<1x128xf32>
    %42 = tpu.concatenate %6, %11, %16, %21, %26, %31, %36, %41 in 0 : vector<1x128xf32>, vector<1x128xf32>, vector<1x128xf32>, vector<1x128xf32>, vector<1x128xf32>, vector<1x128xf32>, vector<1x128xf32>, vector<1x128xf32> -> vector<8x128xf32>
    %c0_8 = arith.constant 0 : index
    %c0_9 = arith.constant 0 : index
    %43 = vector.load %arg2[%c0_8, %c0_9] : memref<128x128xf32, #tpu.memory_space<vmem>>, vector<128x128xf32>
    %cst_10 = arith.constant dense<0.000000e+00> : vector<8x128xf32>
    %44 = tpu.matmul %0, %43, %cst_10 {dimension_numbers = #tpu.dot_dimension_numbers<[1], [0], [0], [1], [0, 0, 1, 1], [], []>} : vector<8x128xf32>, vector<128x128xf32>, vector<8x128xf32> -> vector<8x128xf32>
    %45 = arith.addf %42, %44 : vector<8x128xf32>
    %46 = math.tanh %45 : vector<8x128xf32>
    %c1_i32_11 = arith.constant 1 : i32
    %c8_i32_12 = arith.constant 8 : i32
    %47 = arith.muli %c1_i32_11, %c8_i32_12 : i32
    %c0_i32_13 = arith.constant 0 : i32
    %48 = arith.addi %47, %c0_i32_13 : i32
    %49 = arith.index_cast %48 : i32 to index
    %50 = memref.load %arg0[%49] : memref<64xi32, #tpu.memory_space<smem>>
    %51 = arith.index_cast %50 : i32 to index
    %c0_14 = arith.constant 0 : index
    %52 = vector.load %arg1[%51, %c0_14] : memref<16x128xf32, #tpu.memory_space<vmem>>, vector<1x128xf32>
    %c1_i32_15 = arith.constant 1 : i32
    %53 = arith.addi %47, %c1_i32_15 : i32
    %54 = arith.index_cast %53 : i32 to index
    %55 = memref.load %arg0[%54] : memref<64xi32, #tpu.memory_space<smem>>
    %56 = arith.index_cast %55 : i32 to index
    %c0_16 = arith.constant 0 : index
    %57 = vector.load %arg1[%56, %c0_16] : memref<16x128xf32, #tpu.memory_space<vmem>>, vector<1x128xf32>
    %c2_i32_17 = arith.constant 2 : i32
    %58 = arith.addi %47, %c2_i32_17 : i32
    %59 = arith.index_cast %58 : i32 to index
    %60 = memref.load %arg0[%59] : memref<64xi32, #tpu.memory_space<smem>>
    %61 = arith.index_cast %60 : i32 to index
    %c0_18 = arith.constant 0 : index
    %62 = vector.load %arg1[%61, %c0_18] : memref<16x128xf32, #tpu.memory_space<vmem>>, vector<1x128xf32>
    %c3_i32_19 = arith.constant 3 : i32
    %63 = arith.addi %47, %c3_i32_19 : i32
    %64 = arith.index_cast %63 : i32 to index
    %65 = memref.load %arg0[%64] : memref<64xi32, #tpu.memory_space<smem>>
    %66 = arith.index_cast %65 : i32 to index
    %c0_20 = arith.constant 0 : index
    %67 = vector.load %arg1[%66, %c0_20] : memref<16x128xf32, #tpu.memory_space<vmem>>, vector<1x128xf32>
    %c4_i32_21 = arith.constant 4 : i32
    %68 = arith.addi %47, %c4_i32_21 : i32
    %69 = arith.index_cast %68 : i32 to index
    %70 = memref.load %arg0[%69] : memref<64xi32, #tpu.memory_space<smem>>
    %71 = arith.index_cast %70 : i32 to index
    %c0_22 = arith.constant 0 : index
    %72 = vector.load %arg1[%71, %c0_22] : memref<16x128xf32, #tpu.memory_space<vmem>>, vector<1x128xf32>
    %c5_i32_23 = arith.constant 5 : i32
    %73 = arith.addi %47, %c5_i32_23 : i32
    %74 = arith.index_cast %73 : i32 to index
    %75 = memref.load %arg0[%74] : memref<64xi32, #tpu.memory_space<smem>>
    %76 = arith.index_cast %75 : i32 to index
    %c0_24 = arith.constant 0 : index
    %77 = vector.load %arg1[%76, %c0_24] : memref<16x128xf32, #tpu.memory_space<vmem>>, vector<1x128xf32>
    %c6_i32_25 = arith.constant 6 : i32
    %78 = arith.addi %47, %c6_i32_25 : i32
    %79 = arith.index_cast %78 : i32 to index
    %80 = memref.load %arg0[%79] : memref<64xi32, #tpu.memory_space<smem>>
    %81 = arith.index_cast %80 : i32 to index
    %c0_26 = arith.constant 0 : index
    %82 = vector.load %arg1[%81, %c0_26] : memref<16x128xf32, #tpu.memory_space<vmem>>, vector<1x128xf32>
    %c7_i32_27 = arith.constant 7 : i32
    %83 = arith.addi %47, %c7_i32_27 : i32
    %84 = arith.index_cast %83 : i32 to index
    %85 = memref.load %arg0[%84] : memref<64xi32, #tpu.memory_space<smem>>
    %86 = arith.index_cast %85 : i32 to index
    %c0_28 = arith.constant 0 : index
    %87 = vector.load %arg1[%86, %c0_28] : memref<16x128xf32, #tpu.memory_space<vmem>>, vector<1x128xf32>
    %88 = tpu.concatenate %52, %57, %62, %67, %72, %77, %82, %87 in 0 : vector<1x128xf32>, vector<1x128xf32>, vector<1x128xf32>, vector<1x128xf32>, vector<1x128xf32>, vector<1x128xf32>, vector<1x128xf32>, vector<1x128xf32> -> vector<8x128xf32>
    %c0_29 = arith.constant 0 : index
    %c0_30 = arith.constant 0 : index
    %89 = vector.load %arg2[%c0_29, %c0_30] : memref<128x128xf32, #tpu.memory_space<vmem>>, vector<128x128xf32>
    %cst_31 = arith.constant dense<0.000000e+00> : vector<8x128xf32>
    %90 = tpu.matmul %46, %89, %cst_31 {dimension_numbers = #tpu.dot_dimension_numbers<[1], [0], [0], [1], [0, 0, 1, 1], [], []>} : vector<8x128xf32>, vector<128x128xf32>, vector<8x128xf32> -> vector<8x128xf32>
    %91 = arith.addf %88, %90 : vector<8x128xf32>
    %92 = math.tanh %91 : vector<8x128xf32>
    %c2_i32_32 = arith.constant 2 : i32
    %c8_i32_33 = arith.constant 8 : i32
    %93 = arith.muli %c2_i32_32, %c8_i32_33 : i32
    %c0_i32_34 = arith.constant 0 : i32
    %94 = arith.addi %93, %c0_i32_34 : i32
    %95 = arith.index_cast %94 : i32 to index
    %96 = memref.load %arg0[%95] : memref<64xi32, #tpu.memory_space<smem>>
    %97 = arith.index_cast %96 : i32 to index
    %c0_35 = arith.constant 0 : index
    %98 = vector.load %arg1[%97, %c0_35] : memref<16x128xf32, #tpu.memory_space<vmem>>, vector<1x128xf32>
    %c1_i32_36 = arith.constant 1 : i32
    %99 = arith.addi %93, %c1_i32_36 : i32
    %100 = arith.index_cast %99 : i32 to index
    %101 = memref.load %arg0[%100] : memref<64xi32, #tpu.memory_space<smem>>
    %102 = arith.index_cast %101 : i32 to index
    %c0_37 = arith.constant 0 : index
    %103 = vector.load %arg1[%102, %c0_37] : memref<16x128xf32, #tpu.memory_space<vmem>>, vector<1x128xf32>
    %c2_i32_38 = arith.constant 2 : i32
    %104 = arith.addi %93, %c2_i32_38 : i32
    %105 = arith.index_cast %104 : i32 to index
    %106 = memref.load %arg0[%105] : memref<64xi32, #tpu.memory_space<smem>>
    %107 = arith.index_cast %106 : i32 to index
    %c0_39 = arith.constant 0 : index
    %108 = vector.load %arg1[%107, %c0_39] : memref<16x128xf32, #tpu.memory_space<vmem>>, vector<1x128xf32>
    %c3_i32_40 = arith.constant 3 : i32
    %109 = arith.addi %93, %c3_i32_40 : i32
    %110 = arith.index_cast %109 : i32 to index
    %111 = memref.load %arg0[%110] : memref<64xi32, #tpu.memory_space<smem>>
    %112 = arith.index_cast %111 : i32 to index
    %c0_41 = arith.constant 0 : index
    %113 = vector.load %arg1[%112, %c0_41] : memref<16x128xf32, #tpu.memory_space<vmem>>, vector<1x128xf32>
    %c4_i32_42 = arith.constant 4 : i32
    %114 = arith.addi %93, %c4_i32_42 : i32
    %115 = arith.index_cast %114 : i32 to index
    %116 = memref.load %arg0[%115] : memref<64xi32, #tpu.memory_space<smem>>
    %117 = arith.index_cast %116 : i32 to index
    %c0_43 = arith.constant 0 : index
    %118 = vector.load %arg1[%117, %c0_43] : memref<16x128xf32, #tpu.memory_space<vmem>>, vector<1x128xf32>
    %c5_i32_44 = arith.constant 5 : i32
    %119 = arith.addi %93, %c5_i32_44 : i32
    %120 = arith.index_cast %119 : i32 to index
    %121 = memref.load %arg0[%120] : memref<64xi32, #tpu.memory_space<smem>>
    %122 = arith.index_cast %121 : i32 to index
    %c0_45 = arith.constant 0 : index
    %123 = vector.load %arg1[%122, %c0_45] : memref<16x128xf32, #tpu.memory_space<vmem>>, vector<1x128xf32>
    %c6_i32_46 = arith.constant 6 : i32
    %124 = arith.addi %93, %c6_i32_46 : i32
    %125 = arith.index_cast %124 : i32 to index
    %126 = memref.load %arg0[%125] : memref<64xi32, #tpu.memory_space<smem>>
    %127 = arith.index_cast %126 : i32 to index
    %c0_47 = arith.constant 0 : index
    %128 = vector.load %arg1[%127, %c0_47] : memref<16x128xf32, #tpu.memory_space<vmem>>, vector<1x128xf32>
    %c7_i32_48 = arith.constant 7 : i32
    %129 = arith.addi %93, %c7_i32_48 : i32
    %130 = arith.index_cast %129 : i32 to index
    %131 = memref.load %arg0[%130] : memref<64xi32, #tpu.memory_space<smem>>
    %132 = arith.index_cast %131 : i32 to index
    %c0_49 = arith.constant 0 : index
    %133 = vector.load %arg1[%132, %c0_49] : memref<16x128xf32, #tpu.memory_space<vmem>>, vector<1x128xf32>
    %134 = tpu.concatenate %98, %103, %108, %113, %118, %123, %128, %133 in 0 : vector<1x128xf32>, vector<1x128xf32>, vector<1x128xf32>, vector<1x128xf32>, vector<1x128xf32>, vector<1x128xf32>, vector<1x128xf32>, vector<1x128xf32> -> vector<8x128xf32>
    %c0_50 = arith.constant 0 : index
    %c0_51 = arith.constant 0 : index
    %135 = vector.load %arg2[%c0_50, %c0_51] : memref<128x128xf32, #tpu.memory_space<vmem>>, vector<128x128xf32>
    %cst_52 = arith.constant dense<0.000000e+00> : vector<8x128xf32>
    %136 = tpu.matmul %92, %135, %cst_52 {dimension_numbers = #tpu.dot_dimension_numbers<[1], [0], [0], [1], [0, 0, 1, 1], [], []>} : vector<8x128xf32>, vector<128x128xf32>, vector<8x128xf32> -> vector<8x128xf32>
    %137 = arith.addf %134, %136 : vector<8x128xf32>
    %138 = math.tanh %137 : vector<8x128xf32>
    %c3_i32_53 = arith.constant 3 : i32
    %c8_i32_54 = arith.constant 8 : i32
    %139 = arith.muli %c3_i32_53, %c8_i32_54 : i32
    %c0_i32_55 = arith.constant 0 : i32
    %140 = arith.addi %139, %c0_i32_55 : i32
    %141 = arith.index_cast %140 : i32 to index
    %142 = memref.load %arg0[%141] : memref<64xi32, #tpu.memory_space<smem>>
    %143 = arith.index_cast %142 : i32 to index
    %c0_56 = arith.constant 0 : index
    %144 = vector.load %arg1[%143, %c0_56] : memref<16x128xf32, #tpu.memory_space<vmem>>, vector<1x128xf32>
    %c1_i32_57 = arith.constant 1 : i32
    %145 = arith.addi %139, %c1_i32_57 : i32
    %146 = arith.index_cast %145 : i32 to index
    %147 = memref.load %arg0[%146] : memref<64xi32, #tpu.memory_space<smem>>
    %148 = arith.index_cast %147 : i32 to index
    %c0_58 = arith.constant 0 : index
    %149 = vector.load %arg1[%148, %c0_58] : memref<16x128xf32, #tpu.memory_space<vmem>>, vector<1x128xf32>
    %c2_i32_59 = arith.constant 2 : i32
    %150 = arith.addi %139, %c2_i32_59 : i32
    %151 = arith.index_cast %150 : i32 to index
    %152 = memref.load %arg0[%151] : memref<64xi32, #tpu.memory_space<smem>>
    %153 = arith.index_cast %152 : i32 to index
    %c0_60 = arith.constant 0 : index
    %154 = vector.load %arg1[%153, %c0_60] : memref<16x128xf32, #tpu.memory_space<vmem>>, vector<1x128xf32>
    %c3_i32_61 = arith.constant 3 : i32
    %155 = arith.addi %139, %c3_i32_61 : i32
    %156 = arith.index_cast %155 : i32 to index
    %157 = memref.load %arg0[%156] : memref<64xi32, #tpu.memory_space<smem>>
    %158 = arith.index_cast %157 : i32 to index
    %c0_62 = arith.constant 0 : index
    %159 = vector.load %arg1[%158, %c0_62] : memref<16x128xf32, #tpu.memory_space<vmem>>, vector<1x128xf32>
    %c4_i32_63 = arith.constant 4 : i32
    %160 = arith.addi %139, %c4_i32_63 : i32
    %161 = arith.index_cast %160 : i32 to index
    %162 = memref.load %arg0[%161] : memref<64xi32, #tpu.memory_space<smem>>
    %163 = arith.index_cast %162 : i32 to index
    %c0_64 = arith.constant 0 : index
    %164 = vector.load %arg1[%163, %c0_64] : memref<16x128xf32, #tpu.memory_space<vmem>>, vector<1x128xf32>
    %c5_i32_65 = arith.constant 5 : i32
    %165 = arith.addi %139, %c5_i32_65 : i32
    %166 = arith.index_cast %165 : i32 to index
    %167 = memref.load %arg0[%166] : memref<64xi32, #tpu.memory_space<smem>>
    %168 = arith.index_cast %167 : i32 to index
    %c0_66 = arith.constant 0 : index
    %169 = vector.load %arg1[%168, %c0_66] : memref<16x128xf32, #tpu.memory_space<vmem>>, vector<1x128xf32>
    %c6_i32_67 = arith.constant 6 : i32
    %170 = arith.addi %139, %c6_i32_67 : i32
    %171 = arith.index_cast %170 : i32 to index
    %172 = memref.load %arg0[%171] : memref<64xi32, #tpu.memory_space<smem>>
    %173 = arith.index_cast %172 : i32 to index
    %c0_68 = arith.constant 0 : index
    %174 = vector.load %arg1[%173, %c0_68] : memref<16x128xf32, #tpu.memory_space<vmem>>, vector<1x128xf32>
    %c7_i32_69 = arith.constant 7 : i32
    %175 = arith.addi %139, %c7_i32_69 : i32
    %176 = arith.index_cast %175 : i32 to index
    %177 = memref.load %arg0[%176] : memref<64xi32, #tpu.memory_space<smem>>
    %178 = arith.index_cast %177 : i32 to index
    %c0_70 = arith.constant 0 : index
    %179 = vector.load %arg1[%178, %c0_70] : memref<16x128xf32, #tpu.memory_space<vmem>>, vector<1x128xf32>
    %180 = tpu.concatenate %144, %149, %154, %159, %164, %169, %174, %179 in 0 : vector<1x128xf32>, vector<1x128xf32>, vector<1x128xf32>, vector<1x128xf32>, vector<1x128xf32>, vector<1x128xf32>, vector<1x128xf32>, vector<1x128xf32> -> vector<8x128xf32>
    %c0_71 = arith.constant 0 : index
    %c0_72 = arith.constant 0 : index
    %181 = vector.load %arg2[%c0_71, %c0_72] : memref<128x128xf32, #tpu.memory_space<vmem>>, vector<128x128xf32>
    %cst_73 = arith.constant dense<0.000000e+00> : vector<8x128xf32>
    %182 = tpu.matmul %138, %181, %cst_73 {dimension_numbers = #tpu.dot_dimension_numbers<[1], [0], [0], [1], [0, 0, 1, 1], [], []>} : vector<8x128xf32>, vector<128x128xf32>, vector<8x128xf32> -> vector<8x128xf32>
    %183 = arith.addf %180, %182 : vector<8x128xf32>
    %184 = math.tanh %183 : vector<8x128xf32>
    %c4_i32_74 = arith.constant 4 : i32
    %c8_i32_75 = arith.constant 8 : i32
    %185 = arith.muli %c4_i32_74, %c8_i32_75 : i32
    %c0_i32_76 = arith.constant 0 : i32
    %186 = arith.addi %185, %c0_i32_76 : i32
    %187 = arith.index_cast %186 : i32 to index
    %188 = memref.load %arg0[%187] : memref<64xi32, #tpu.memory_space<smem>>
    %189 = arith.index_cast %188 : i32 to index
    %c0_77 = arith.constant 0 : index
    %190 = vector.load %arg1[%189, %c0_77] : memref<16x128xf32, #tpu.memory_space<vmem>>, vector<1x128xf32>
    %c1_i32_78 = arith.constant 1 : i32
    %191 = arith.addi %185, %c1_i32_78 : i32
    %192 = arith.index_cast %191 : i32 to index
    %193 = memref.load %arg0[%192] : memref<64xi32, #tpu.memory_space<smem>>
    %194 = arith.index_cast %193 : i32 to index
    %c0_79 = arith.constant 0 : index
    %195 = vector.load %arg1[%194, %c0_79] : memref<16x128xf32, #tpu.memory_space<vmem>>, vector<1x128xf32>
    %c2_i32_80 = arith.constant 2 : i32
    %196 = arith.addi %185, %c2_i32_80 : i32
    %197 = arith.index_cast %196 : i32 to index
    %198 = memref.load %arg0[%197] : memref<64xi32, #tpu.memory_space<smem>>
    %199 = arith.index_cast %198 : i32 to index
    %c0_81 = arith.constant 0 : index
    %200 = vector.load %arg1[%199, %c0_81] : memref<16x128xf32, #tpu.memory_space<vmem>>, vector<1x128xf32>
    %c3_i32_82 = arith.constant 3 : i32
    %201 = arith.addi %185, %c3_i32_82 : i32
    %202 = arith.index_cast %201 : i32 to index
    %203 = memref.load %arg0[%202] : memref<64xi32, #tpu.memory_space<smem>>
    %204 = arith.index_cast %203 : i32 to index
    %c0_83 = arith.constant 0 : index
    %205 = vector.load %arg1[%204, %c0_83] : memref<16x128xf32, #tpu.memory_space<vmem>>, vector<1x128xf32>
    %c4_i32_84 = arith.constant 4 : i32
    %206 = arith.addi %185, %c4_i32_84 : i32
    %207 = arith.index_cast %206 : i32 to index
    %208 = memref.load %arg0[%207] : memref<64xi32, #tpu.memory_space<smem>>
    %209 = arith.index_cast %208 : i32 to index
    %c0_85 = arith.constant 0 : index
    %210 = vector.load %arg1[%209, %c0_85] : memref<16x128xf32, #tpu.memory_space<vmem>>, vector<1x128xf32>
    %c5_i32_86 = arith.constant 5 : i32
    %211 = arith.addi %185, %c5_i32_86 : i32
    %212 = arith.index_cast %211 : i32 to index
    %213 = memref.load %arg0[%212] : memref<64xi32, #tpu.memory_space<smem>>
    %214 = arith.index_cast %213 : i32 to index
    %c0_87 = arith.constant 0 : index
    %215 = vector.load %arg1[%214, %c0_87] : memref<16x128xf32, #tpu.memory_space<vmem>>, vector<1x128xf32>
    %c6_i32_88 = arith.constant 6 : i32
    %216 = arith.addi %185, %c6_i32_88 : i32
    %217 = arith.index_cast %216 : i32 to index
    %218 = memref.load %arg0[%217] : memref<64xi32, #tpu.memory_space<smem>>
    %219 = arith.index_cast %218 : i32 to index
    %c0_89 = arith.constant 0 : index
    %220 = vector.load %arg1[%219, %c0_89] : memref<16x128xf32, #tpu.memory_space<vmem>>, vector<1x128xf32>
    %c7_i32_90 = arith.constant 7 : i32
    %221 = arith.addi %185, %c7_i32_90 : i32
    %222 = arith.index_cast %221 : i32 to index
    %223 = memref.load %arg0[%222] : memref<64xi32, #tpu.memory_space<smem>>
    %224 = arith.index_cast %223 : i32 to index
    %c0_91 = arith.constant 0 : index
    %225 = vector.load %arg1[%224, %c0_91] : memref<16x128xf32, #tpu.memory_space<vmem>>, vector<1x128xf32>
    %226 = tpu.concatenate %190, %195, %200, %205, %210, %215, %220, %225 in 0 : vector<1x128xf32>, vector<1x128xf32>, vector<1x128xf32>, vector<1x128xf32>, vector<1x128xf32>, vector<1x128xf32>, vector<1x128xf32>, vector<1x128xf32> -> vector<8x128xf32>
    %c0_92 = arith.constant 0 : index
    %c0_93 = arith.constant 0 : index
    %227 = vector.load %arg2[%c0_92, %c0_93] : memref<128x128xf32, #tpu.memory_space<vmem>>, vector<128x128xf32>
    %cst_94 = arith.constant dense<0.000000e+00> : vector<8x128xf32>
    %228 = tpu.matmul %184, %227, %cst_94 {dimension_numbers = #tpu.dot_dimension_numbers<[1], [0], [0], [1], [0, 0, 1, 1], [], []>} : vector<8x128xf32>, vector<128x128xf32>, vector<8x128xf32> -> vector<8x128xf32>
    %229 = arith.addf %226, %228 : vector<8x128xf32>
    %230 = math.tanh %229 : vector<8x128xf32>
    %c5_i32_95 = arith.constant 5 : i32
    %c8_i32_96 = arith.constant 8 : i32
    %231 = arith.muli %c5_i32_95, %c8_i32_96 : i32
    %c0_i32_97 = arith.constant 0 : i32
    %232 = arith.addi %231, %c0_i32_97 : i32
    %233 = arith.index_cast %232 : i32 to index
    %234 = memref.load %arg0[%233] : memref<64xi32, #tpu.memory_space<smem>>
    %235 = arith.index_cast %234 : i32 to index
    %c0_98 = arith.constant 0 : index
    %236 = vector.load %arg1[%235, %c0_98] : memref<16x128xf32, #tpu.memory_space<vmem>>, vector<1x128xf32>
    %c1_i32_99 = arith.constant 1 : i32
    %237 = arith.addi %231, %c1_i32_99 : i32
    %238 = arith.index_cast %237 : i32 to index
    %239 = memref.load %arg0[%238] : memref<64xi32, #tpu.memory_space<smem>>
    %240 = arith.index_cast %239 : i32 to index
    %c0_100 = arith.constant 0 : index
    %241 = vector.load %arg1[%240, %c0_100] : memref<16x128xf32, #tpu.memory_space<vmem>>, vector<1x128xf32>
    %c2_i32_101 = arith.constant 2 : i32
    %242 = arith.addi %231, %c2_i32_101 : i32
    %243 = arith.index_cast %242 : i32 to index
    %244 = memref.load %arg0[%243] : memref<64xi32, #tpu.memory_space<smem>>
    %245 = arith.index_cast %244 : i32 to index
    %c0_102 = arith.constant 0 : index
    %246 = vector.load %arg1[%245, %c0_102] : memref<16x128xf32, #tpu.memory_space<vmem>>, vector<1x128xf32>
    %c3_i32_103 = arith.constant 3 : i32
    %247 = arith.addi %231, %c3_i32_103 : i32
    %248 = arith.index_cast %247 : i32 to index
    %249 = memref.load %arg0[%248] : memref<64xi32, #tpu.memory_space<smem>>
    %250 = arith.index_cast %249 : i32 to index
    %c0_104 = arith.constant 0 : index
    %251 = vector.load %arg1[%250, %c0_104] : memref<16x128xf32, #tpu.memory_space<vmem>>, vector<1x128xf32>
    %c4_i32_105 = arith.constant 4 : i32
    %252 = arith.addi %231, %c4_i32_105 : i32
    %253 = arith.index_cast %252 : i32 to index
    %254 = memref.load %arg0[%253] : memref<64xi32, #tpu.memory_space<smem>>
    %255 = arith.index_cast %254 : i32 to index
    %c0_106 = arith.constant 0 : index
    %256 = vector.load %arg1[%255, %c0_106] : memref<16x128xf32, #tpu.memory_space<vmem>>, vector<1x128xf32>
    %c5_i32_107 = arith.constant 5 : i32
    %257 = arith.addi %231, %c5_i32_107 : i32
    %258 = arith.index_cast %257 : i32 to index
    %259 = memref.load %arg0[%258] : memref<64xi32, #tpu.memory_space<smem>>
    %260 = arith.index_cast %259 : i32 to index
    %c0_108 = arith.constant 0 : index
    %261 = vector.load %arg1[%260, %c0_108] : memref<16x128xf32, #tpu.memory_space<vmem>>, vector<1x128xf32>
    %c6_i32_109 = arith.constant 6 : i32
    %262 = arith.addi %231, %c6_i32_109 : i32
    %263 = arith.index_cast %262 : i32 to index
    %264 = memref.load %arg0[%263] : memref<64xi32, #tpu.memory_space<smem>>
    %265 = arith.index_cast %264 : i32 to index
    %c0_110 = arith.constant 0 : index
    %266 = vector.load %arg1[%265, %c0_110] : memref<16x128xf32, #tpu.memory_space<vmem>>, vector<1x128xf32>
    %c7_i32_111 = arith.constant 7 : i32
    %267 = arith.addi %231, %c7_i32_111 : i32
    %268 = arith.index_cast %267 : i32 to index
    %269 = memref.load %arg0[%268] : memref<64xi32, #tpu.memory_space<smem>>
    %270 = arith.index_cast %269 : i32 to index
    %c0_112 = arith.constant 0 : index
    %271 = vector.load %arg1[%270, %c0_112] : memref<16x128xf32, #tpu.memory_space<vmem>>, vector<1x128xf32>
    %272 = tpu.concatenate %236, %241, %246, %251, %256, %261, %266, %271 in 0 : vector<1x128xf32>, vector<1x128xf32>, vector<1x128xf32>, vector<1x128xf32>, vector<1x128xf32>, vector<1x128xf32>, vector<1x128xf32>, vector<1x128xf32> -> vector<8x128xf32>
    %c0_113 = arith.constant 0 : index
    %c0_114 = arith.constant 0 : index
    %273 = vector.load %arg2[%c0_113, %c0_114] : memref<128x128xf32, #tpu.memory_space<vmem>>, vector<128x128xf32>
    %cst_115 = arith.constant dense<0.000000e+00> : vector<8x128xf32>
    %274 = tpu.matmul %230, %273, %cst_115 {dimension_numbers = #tpu.dot_dimension_numbers<[1], [0], [0], [1], [0, 0, 1, 1], [], []>} : vector<8x128xf32>, vector<128x128xf32>, vector<8x128xf32> -> vector<8x128xf32>
    %275 = arith.addf %272, %274 : vector<8x128xf32>
    %276 = math.tanh %275 : vector<8x128xf32>
    %c6_i32_116 = arith.constant 6 : i32
    %c8_i32_117 = arith.constant 8 : i32
    %277 = arith.muli %c6_i32_116, %c8_i32_117 : i32
    %c0_i32_118 = arith.constant 0 : i32
    %278 = arith.addi %277, %c0_i32_118 : i32
    %279 = arith.index_cast %278 : i32 to index
    %280 = memref.load %arg0[%279] : memref<64xi32, #tpu.memory_space<smem>>
    %281 = arith.index_cast %280 : i32 to index
    %c0_119 = arith.constant 0 : index
    %282 = vector.load %arg1[%281, %c0_119] : memref<16x128xf32, #tpu.memory_space<vmem>>, vector<1x128xf32>
    %c1_i32_120 = arith.constant 1 : i32
    %283 = arith.addi %277, %c1_i32_120 : i32
    %284 = arith.index_cast %283 : i32 to index
    %285 = memref.load %arg0[%284] : memref<64xi32, #tpu.memory_space<smem>>
    %286 = arith.index_cast %285 : i32 to index
    %c0_121 = arith.constant 0 : index
    %287 = vector.load %arg1[%286, %c0_121] : memref<16x128xf32, #tpu.memory_space<vmem>>, vector<1x128xf32>
    %c2_i32_122 = arith.constant 2 : i32
    %288 = arith.addi %277, %c2_i32_122 : i32
    %289 = arith.index_cast %288 : i32 to index
    %290 = memref.load %arg0[%289] : memref<64xi32, #tpu.memory_space<smem>>
    %291 = arith.index_cast %290 : i32 to index
    %c0_123 = arith.constant 0 : index
    %292 = vector.load %arg1[%291, %c0_123] : memref<16x128xf32, #tpu.memory_space<vmem>>, vector<1x128xf32>
    %c3_i32_124 = arith.constant 3 : i32
    %293 = arith.addi %277, %c3_i32_124 : i32
    %294 = arith.index_cast %293 : i32 to index
    %295 = memref.load %arg0[%294] : memref<64xi32, #tpu.memory_space<smem>>
    %296 = arith.index_cast %295 : i32 to index
    %c0_125 = arith.constant 0 : index
    %297 = vector.load %arg1[%296, %c0_125] : memref<16x128xf32, #tpu.memory_space<vmem>>, vector<1x128xf32>
    %c4_i32_126 = arith.constant 4 : i32
    %298 = arith.addi %277, %c4_i32_126 : i32
    %299 = arith.index_cast %298 : i32 to index
    %300 = memref.load %arg0[%299] : memref<64xi32, #tpu.memory_space<smem>>
    %301 = arith.index_cast %300 : i32 to index
    %c0_127 = arith.constant 0 : index
    %302 = vector.load %arg1[%301, %c0_127] : memref<16x128xf32, #tpu.memory_space<vmem>>, vector<1x128xf32>
    %c5_i32_128 = arith.constant 5 : i32
    %303 = arith.addi %277, %c5_i32_128 : i32
    %304 = arith.index_cast %303 : i32 to index
    %305 = memref.load %arg0[%304] : memref<64xi32, #tpu.memory_space<smem>>
    %306 = arith.index_cast %305 : i32 to index
    %c0_129 = arith.constant 0 : index
    %307 = vector.load %arg1[%306, %c0_129] : memref<16x128xf32, #tpu.memory_space<vmem>>, vector<1x128xf32>
    %c6_i32_130 = arith.constant 6 : i32
    %308 = arith.addi %277, %c6_i32_130 : i32
    %309 = arith.index_cast %308 : i32 to index
    %310 = memref.load %arg0[%309] : memref<64xi32, #tpu.memory_space<smem>>
    %311 = arith.index_cast %310 : i32 to index
    %c0_131 = arith.constant 0 : index
    %312 = vector.load %arg1[%311, %c0_131] : memref<16x128xf32, #tpu.memory_space<vmem>>, vector<1x128xf32>
    %c7_i32_132 = arith.constant 7 : i32
    %313 = arith.addi %277, %c7_i32_132 : i32
    %314 = arith.index_cast %313 : i32 to index
    %315 = memref.load %arg0[%314] : memref<64xi32, #tpu.memory_space<smem>>
    %316 = arith.index_cast %315 : i32 to index
    %c0_133 = arith.constant 0 : index
    %317 = vector.load %arg1[%316, %c0_133] : memref<16x128xf32, #tpu.memory_space<vmem>>, vector<1x128xf32>
    %318 = tpu.concatenate %282, %287, %292, %297, %302, %307, %312, %317 in 0 : vector<1x128xf32>, vector<1x128xf32>, vector<1x128xf32>, vector<1x128xf32>, vector<1x128xf32>, vector<1x128xf32>, vector<1x128xf32>, vector<1x128xf32> -> vector<8x128xf32>
    %c0_134 = arith.constant 0 : index
    %c0_135 = arith.constant 0 : index
    %319 = vector.load %arg2[%c0_134, %c0_135] : memref<128x128xf32, #tpu.memory_space<vmem>>, vector<128x128xf32>
    %cst_136 = arith.constant dense<0.000000e+00> : vector<8x128xf32>
    %320 = tpu.matmul %276, %319, %cst_136 {dimension_numbers = #tpu.dot_dimension_numbers<[1], [0], [0], [1], [0, 0, 1, 1], [], []>} : vector<8x128xf32>, vector<128x128xf32>, vector<8x128xf32> -> vector<8x128xf32>
    %321 = arith.addf %318, %320 : vector<8x128xf32>
    %322 = math.tanh %321 : vector<8x128xf32>
    %c7_i32_137 = arith.constant 7 : i32
    %c8_i32_138 = arith.constant 8 : i32
    %323 = arith.muli %c7_i32_137, %c8_i32_138 : i32
    %c0_i32_139 = arith.constant 0 : i32
    %324 = arith.addi %323, %c0_i32_139 : i32
    %325 = arith.index_cast %324 : i32 to index
    %326 = memref.load %arg0[%325] : memref<64xi32, #tpu.memory_space<smem>>
    %327 = arith.index_cast %326 : i32 to index
    %c0_140 = arith.constant 0 : index
    %328 = vector.load %arg1[%327, %c0_140] : memref<16x128xf32, #tpu.memory_space<vmem>>, vector<1x128xf32>
    %c1_i32_141 = arith.constant 1 : i32
    %329 = arith.addi %323, %c1_i32_141 : i32
    %330 = arith.index_cast %329 : i32 to index
    %331 = memref.load %arg0[%330] : memref<64xi32, #tpu.memory_space<smem>>
    %332 = arith.index_cast %331 : i32 to index
    %c0_142 = arith.constant 0 : index
    %333 = vector.load %arg1[%332, %c0_142] : memref<16x128xf32, #tpu.memory_space<vmem>>, vector<1x128xf32>
    %c2_i32_143 = arith.constant 2 : i32
    %334 = arith.addi %323, %c2_i32_143 : i32
    %335 = arith.index_cast %334 : i32 to index
    %336 = memref.load %arg0[%335] : memref<64xi32, #tpu.memory_space<smem>>
    %337 = arith.index_cast %336 : i32 to index
    %c0_144 = arith.constant 0 : index
    %338 = vector.load %arg1[%337, %c0_144] : memref<16x128xf32, #tpu.memory_space<vmem>>, vector<1x128xf32>
    %c3_i32_145 = arith.constant 3 : i32
    %339 = arith.addi %323, %c3_i32_145 : i32
    %340 = arith.index_cast %339 : i32 to index
    %341 = memref.load %arg0[%340] : memref<64xi32, #tpu.memory_space<smem>>
    %342 = arith.index_cast %341 : i32 to index
    %c0_146 = arith.constant 0 : index
    %343 = vector.load %arg1[%342, %c0_146] : memref<16x128xf32, #tpu.memory_space<vmem>>, vector<1x128xf32>
    %c4_i32_147 = arith.constant 4 : i32
    %344 = arith.addi %323, %c4_i32_147 : i32
    %345 = arith.index_cast %344 : i32 to index
    %346 = memref.load %arg0[%345] : memref<64xi32, #tpu.memory_space<smem>>
    %347 = arith.index_cast %346 : i32 to index
    %c0_148 = arith.constant 0 : index
    %348 = vector.load %arg1[%347, %c0_148] : memref<16x128xf32, #tpu.memory_space<vmem>>, vector<1x128xf32>
    %c5_i32_149 = arith.constant 5 : i32
    %349 = arith.addi %323, %c5_i32_149 : i32
    %350 = arith.index_cast %349 : i32 to index
    %351 = memref.load %arg0[%350] : memref<64xi32, #tpu.memory_space<smem>>
    %352 = arith.index_cast %351 : i32 to index
    %c0_150 = arith.constant 0 : index
    %353 = vector.load %arg1[%352, %c0_150] : memref<16x128xf32, #tpu.memory_space<vmem>>, vector<1x128xf32>
    %c6_i32_151 = arith.constant 6 : i32
    %354 = arith.addi %323, %c6_i32_151 : i32
    %355 = arith.index_cast %354 : i32 to index
    %356 = memref.load %arg0[%355] : memref<64xi32, #tpu.memory_space<smem>>
    %357 = arith.index_cast %356 : i32 to index
    %c0_152 = arith.constant 0 : index
    %358 = vector.load %arg1[%357, %c0_152] : memref<16x128xf32, #tpu.memory_space<vmem>>, vector<1x128xf32>
    %c7_i32_153 = arith.constant 7 : i32
    %359 = arith.addi %323, %c7_i32_153 : i32
    %360 = arith.index_cast %359 : i32 to index
    %361 = memref.load %arg0[%360] : memref<64xi32, #tpu.memory_space<smem>>
    %362 = arith.index_cast %361 : i32 to index
    %c0_154 = arith.constant 0 : index
    %363 = vector.load %arg1[%362, %c0_154] : memref<16x128xf32, #tpu.memory_space<vmem>>, vector<1x128xf32>
    %364 = tpu.concatenate %328, %333, %338, %343, %348, %353, %358, %363 in 0 : vector<1x128xf32>, vector<1x128xf32>, vector<1x128xf32>, vector<1x128xf32>, vector<1x128xf32>, vector<1x128xf32>, vector<1x128xf32>, vector<1x128xf32> -> vector<8x128xf32>
    %c0_155 = arith.constant 0 : index
    %c0_156 = arith.constant 0 : index
    %365 = vector.load %arg2[%c0_155, %c0_156] : memref<128x128xf32, #tpu.memory_space<vmem>>, vector<128x128xf32>
    %cst_157 = arith.constant dense<0.000000e+00> : vector<8x128xf32>
    %366 = tpu.matmul %322, %365, %cst_157 {dimension_numbers = #tpu.dot_dimension_numbers<[1], [0], [0], [1], [0, 0, 1, 1], [], []>} : vector<8x128xf32>, vector<128x128xf32>, vector<8x128xf32> -> vector<8x128xf32>
    %367 = arith.addf %364, %366 : vector<8x128xf32>
    %368 = math.tanh %367 : vector<8x128xf32>
    %c8_i32_158 = arith.constant 8 : i32
    %c0_159 = arith.constant 0 : index
    %c0_160 = arith.constant 0 : index
    %369 = vector.load %arg3[%c0_159, %c0_160] : memref<8x128xf32, #tpu.memory_space<vmem>>, vector<8x128xf32>
    tpu.vector_store %arg3[%c0_159, %c0_160], %368 {strides = array<i32>} : memref<8x128xf32, #tpu.memory_space<vmem>>, vector<8x128xf32>,
    return
  }
}

</mosaic_0001>

<llo_original>
// kernel: tpu_custom_call.1
$region0: #{tpu_custom_call.1}
  #allocation0 [shape = 'u32[]', space=smem, size = 0x4, offset = 0x4, fixed_abs, tag = 'smem constant byte address 0x4 - core index']
  #allocation1 [shape = 'u32[144,128]{1,0:T(1,128)}', space=vmem, size = 0x12000, scoped, tag = 'internal scratch']
  %s0 = inlined_call_operand.hbm [shape: s32[64], index: 0, kind: input, shape index: {}]
  %s1 = inlined_call_operand.hbm [shape: f32[16,128], index: 1, kind: input, shape index: {}]
  %s2 = inlined_call_operand.hbm [shape: f32[128,128], index: 2, kind: input, shape index: {}]
  %s3 = inlined_call_operand.hbm [shape: f32[8,128], index: 3, kind: output, shape index: {}]
  %s4 = sld [smem:[#allocation0]]
  $region34: #{tpu_custom_call.1} parent=0
    _
  %s6 = ssub.s32 1, %s4
  %s7 = scalar_select 0, %s6, %s4
  $region1: #{tpu_custom_call.1} parent=0
    #allocation2 [shape = 'u8[512]{0}', space=smem, size = 0x200, scoped, tag = 'input window, operand 0, single buffered']
    #allocation3 [shape = 's32[1]{0}', space=sflag, size = 0x4, scoped, tag = 'scoped memory for tpu_custom_call.1']
    #allocation4 [shape = 's32[1]{0}', space=sflag, size = 0x4, scoped, tag = 'scoped memory for tpu_custom_call.1']
    #allocation5 [shape = 's32[1]{0}', space=sflag, size = 0x4, scoped, tag = 'scoped memory for tpu_custom_call.1']
    #allocation6 [shape = 'u8[8192]{0}', space=vmem, size = 0x2000, scoped, tag = 'input window, operand 1, single buffered']
    #allocation7 [shape = 'u8[65536]{0}', space=vmem, size = 0x10000, scoped, tag = 'input window, operand 2, single buffered']
    #allocation8 [shape = 's32[1]{0}', space=sflag, size = 0x4, scoped, tag = 'scoped memory for tpu_custom_call.1']
    #allocation9 [shape = 'u8[4096]{0}', space=vmem, size = 0x1000, scoped, tag = 'output window, operand 0, single buffered']
    %8 = vsyncpa [#allocation5], 0
    %9 = vsyncpa [#allocation3], 0
    %10 = vsyncpa [#allocation8], 0
    %11 = vsyncpa [#allocation4], 0
    // Predicated region
    $region2: #{tpu_custom_call.1} parent=1 // pred_check
      _
    $region3: #{tpu_custom_call.1} parent=1 // pred_check_branch
      %13 = sbr.rel (0) target = $region5
    $region4: #{tpu_custom_call.1} parent=1 // pred_region
      %s15 = ssub.s32 16, 16
      %16 = vsyncadd [#allocation5], %s15
      %19 = dma.hbm_to_smem %s0, 16, [#allocation2], [#allocation5]
    $region5: #{tpu_custom_call.1} parent=1 // pred_fallthru
      _
    // Predicated region
    $region6: #{tpu_custom_call.1} parent=1 // pred_check
      _
    $region7: #{tpu_custom_call.1} parent=1 // pred_check_branch
      %21 = sbr.rel (0) target = $region9
    $region8: #{tpu_custom_call.1} parent=1 // pred_region
      %s23 = ssub.s32 256, 256
      %24 = vsyncadd [#allocation3], %s23
      %s25 = sshll.u32 [#allocation6], 4
      %s26 = int_to_ptr.vmem [resolvable:$true] %s25
      %31 = dma.hbm_to_vmem [thread:$0]  %s1, 256, %s26, [#allocation3], 128, 128, 8
    $region9: #{tpu_custom_call.1} parent=1 // pred_fallthru
      _
    // Predicated region
    $region10: #{tpu_custom_call.1} parent=1 // pred_check
      _
    $region11: #{tpu_custom_call.1} parent=1 // pred_check_branch
      %33 = sbr.rel (0) target = $region13
    $region12: #{tpu_custom_call.1} parent=1 // pred_region
      %s35 = ssub.s32 2048, 2048
      %36 = vsyncadd [#allocation8], %s35
      %s37 = sshll.u32 [#allocation7], 4
      %s38 = int_to_ptr.vmem [resolvable:$true] %s37
      %43 = dma.hbm_to_vmem [thread:$0]  %s2, 2048, %s38, [#allocation8], 128, 128, 8
    $region13: #{tpu_custom_call.1} parent=1 // pred_fallthru
      _
    // Predicated region
    $region14: #{tpu_custom_call.1} parent=1 // pred_check
      _
    $region15: #{tpu_custom_call.1} parent=1 // pred_check_branch
      %45 = sbr.rel (0) target = $region17
    $region16: #{tpu_custom_call.1} parent=1 // pred_region
      %46 = dma.done [#allocation5], 16
    $region17: #{tpu_custom_call.1} parent=1 // pred_fallthru
      _
    // Predicated region
    $region18: #{tpu_custom_call.1} parent=1 // pred_check
      _
    $region19: #{tpu_custom_call.1} parent=1 // pred_check_branch
      %48 = sbr.rel (0) target = $region21
    $region20: #{tpu_custom_call.1} parent=1 // pred_region
      %49 = dma.done [#allocation3], 256
    $region21: #{tpu_custom_call.1} parent=1 // pred_fallthru
      _
    // Predicated region
    $region22: #{tpu_custom_call.1} parent=1 // pred_check
      _
    $region23: #{tpu_custom_call.1} parent=1 // pred_check_branch
      %51 = sbr.rel (0) target = $region25
    $region24: #{tpu_custom_call.1} parent=1 // pred_region
      %52 = dma.done [#allocation8], 2048
    $region25: #{tpu_custom_call.1} parent=1 // pred_fallthru
      _
    %53 = sfence
    %s54 = sld [smem:[#allocation2]]
    %s55 = scalar_lea.vmem [#allocation6], %s54
    %v56 = vld [vmem:[%s55] sm:$0x1]
    %s57 = sld [smem:[#allocation2 + $0x1]]
    %s58 = scalar_lea.vmem [#allocation6], %s57
    %v59 = vld [vmem:[%s58] sm:$0x1]
    %s60 = sld [smem:[#allocation2 + $0x2]]
    %s61 = scalar_lea.vmem [#allocation6], %s60
    %v62 = vld [vmem:[%s61] sm:$0x1]
    %s63 = sld [smem:[#allocation2 + $0x3]]
    %s64 = scalar_lea.vmem [#allocation6], %s63
    %v65 = vld [vmem:[%s64] sm:$0x1]
    %s66 = sld [smem:[#allocation2 + $0x4]]
    %s67 = scalar_lea.vmem [#allocation6], %s66
    %v68 = vld [vmem:[%s67] sm:$0x1]
    %s69 = sld [smem:[#allocation2 + $0x5]]
    %s70 = scalar_lea.vmem [#allocation6], %s69
    %v71 = vld [vmem:[%s70] sm:$0x1]
    %s72 = sld [smem:[#allocation2 + $0x6]]
    %s73 = scalar_lea.vmem [#allocation6], %s72
    %v74 = vld [vmem:[%s73] sm:$0x1]
    %s75 = sld [smem:[#allocation2 + $0x7]]
    %s76 = scalar_lea.vmem [#allocation6], %s75
    %v77 = vld [vmem:[%s76] sm:$0x1]
    %v79 = vrot.slane %v59, 7
    %v82 = vrot.slane %v62, 6
    %v85 = vrot.slane %v65, 5
    %v88 = vrot.slane %v68, 4
    %v91 = vrot.slane %v71, 3
    %v94 = vrot.slane %v74, 2
    %v97 = vrot.slane %v77, 1
    %vm99 = vcmask 1040384
    %v100 = vsel %vm99, %v56, %v79
    %vm101 = vcmask 1041408
    %v102 = vsel %vm101, %v100, %v82
    %vm103 = vcmask 1042432
    %v104 = vsel %vm103, %v102, %v85
    %vm105 = vcmask 1043456
    %v106 = vsel %vm105, %v104, %v88
    %vm107 = vcmask 1044480
    %v108 = vsel %vm107, %v106, %v91
    %vm109 = vcmask 1045504
    %v110 = vsel %vm109, %v108, %v94
    %vm111 = vcmask 1046528
    %v112 = vsel %vm111, %v110, %v97
    %v113 = vld [vmem:[#allocation7] sm:$0xff]
    %v114 = vld [vmem:[#allocation7 + $0x8] sm:$0xff]
    %v115 = vld [vmem:[#allocation7 + $0x10] sm:$0xff]
    %v116 = vld [vmem:[#allocation7 + $0x18] sm:$0xff]
    %v117 = vld [vmem:[#allocation7 + $0x20] sm:$0xff]
    %v118 = vld [vmem:[#allocation7 + $0x28] sm:$0xff]
    %v119 = vld [vmem:[#allocation7 + $0x30] sm:$0xff]
    %v120 = vld [vmem:[#allocation7 + $0x38] sm:$0xff]
    %v121 = vld [vmem:[#allocation7 + $0x40] sm:$0xff]
    %v122 = vld [vmem:[#allocation7 + $0x48] sm:$0xff]
    %v123 = vld [vmem:[#allocation7 + $0x50] sm:$0xff]
    %v124 = vld [vmem:[#allocation7 + $0x58] sm:$0xff]
    %v125 = vld [vmem:[#allocation7 + $0x60] sm:$0xff]
    %v126 = vld [vmem:[#allocation7 + $0x68] sm:$0xff]
    %v127 = vld [vmem:[#allocation7 + $0x70] sm:$0xff]
    %v128 = vld [vmem:[#allocation7 + $0x78] sm:$0xff]
    %129 = vmatprep.subr.mxu0 0.0
    %130 = vmatpush1.msra.mxu0 %v128
    %131 = vmatprep.subr.mxu0 0.0
    %132 = vmatpush1.msra.mxu0 %v127
    %133 = vmatprep.subr.mxu0 0.0
    %134 = vmatpush1.msra.mxu0 %v126
    %135 = vmatprep.subr.mxu0 0.0
    %136 = vmatpush1.msra.mxu0 %v125
    %137 = vmatprep.subr.mxu0 0.0
    %138 = vmatpush1.msra.mxu0 %v124
    %139 = vmatprep.subr.mxu0 0.0
    %140 = vmatpush1.msra.mxu0 %v123
    %141 = vmatprep.subr.mxu0 0.0
    %142 = vmatpush1.msra.mxu0 %v122
    %143 = vmatprep.subr.mxu0 0.0
    %144 = vmatpush1.msra.mxu0 %v121
    %145 = vmatprep.subr.mxu0 0.0
    %146 = vmatpush1.msra.mxu0 %v120
    %147 = vmatprep.subr.mxu0 0.0
    %148 = vmatpush1.msra.mxu0 %v119
    %149 = vmatprep.subr.mxu0 0.0
    %150 = vmatpush1.msra.mxu0 %v118
    %151 = vmatprep.subr.mxu0 0.0
    %152 = vmatpush1.msra.mxu0 %v117
    %153 = vmatprep.subr.mxu0 0.0
    %154 = vmatpush1.msra.mxu0 %v116
    %155 = vmatprep.subr.mxu0 0.0
    %156 = vmatpush1.msra.mxu0 %v115
    %157 = vmatprep.subr.mxu0 0.0
    %158 = vmatpush1.msra.mxu0 %v114
    %159 = vmatprep.subr.mxu0 0.0
    %160 = vmatpush1.msra.mxu0 %v113
    %161 = vmatprep.subr.mxu0 0.0
    %162 = vmatpush2.msra.mxu0 0.0
    %163 = vmatprep.subr.mxu0 0.0
    %164 = vmatpush2.msra.mxu0 0.0
    %165 = vmatprep.subr.mxu0 0.0
    %166 = vmatpush2.msra.mxu0 0.0
    %167 = vmatprep.subr.mxu0 0.0
    %168 = vmatpush2.msra.mxu0 0.0
    %169 = vmatprep.subr.mxu0 0.0
    %170 = vmatpush2.msra.mxu0 0.0
    %171 = vmatprep.subr.mxu0 0.0
    %172 = vmatpush2.msra.mxu0 0.0
    %173 = vmatprep.subr.mxu0 0.0
    %174 = vmatpush2.msra.mxu0 0.0
    %175 = vmatprep.subr.mxu0 0.0
    %176 = vmatpush2.msra.mxu0 0.0
    %177 = vmatprep.subr.mxu0 0.0
    %178 = vmatpush2.msra.mxu0 0.0
    %179 = vmatprep.subr.mxu0 0.0
    %180 = vmatpush2.msra.mxu0 0.0
    %181 = vmatprep.subr.mxu0 0.0
    %182 = vmatpush2.msra.mxu0 0.0
    %183 = vmatprep.subr.mxu0 0.0
    %184 = vmatpush2.msra.mxu0 0.0
    %185 = vmatprep.subr.mxu0 0.0
    %186 = vmatpush2.msra.mxu0 0.0
    %187 = vmatprep.subr.mxu0 0.0
    %188 = vmatpush2.msra.mxu0 0.0
    %189 = vmatprep.subr.mxu0 0.0
    %190 = vmatpush2.msra.mxu0 0.0
    %191 = vmatprep.subr.mxu0 0.0
    %192 = vmatpush2.msra.mxu0 0.0
    %193 = vmatprep.mubr.f32.mxu0 0.0
    %194 = vmatmul.mubr.f32.gmra.mxu0 0.0
    %v195 = vpop.f32.mrf.mxu0
    %v196 = vadd.f32 0.0, %v195
    %v197 = vpop.f32.mrf.mxu0
    %198 = vdwg.mxu0
    %v199 = vadd.f32 %v112, %v196
    %v200 = vtanh.pop %v199
    %s201 = sld [smem:[#allocation2 + $0x8]]
    %s202 = scalar_lea.vmem [#allocation6], %s201
    %v203 = vld [vmem:[%s202] sm:$0x1]
    %s204 = sld [smem:[#allocation2 + $0x9]]
    %s205 = scalar_lea.vmem [#allocation6], %s204
    %v206 = vld [vmem:[%s205] sm:$0x1]
    %s207 = sld [smem:[#allocation2 + $0xa]]
    %s208 = scalar_lea.vmem [#allocation6], %s207
    %v209 = vld [vmem:[%s208] sm:$0x1]
    %s210 = sld [smem:[#allocation2 + $0xb]]
    %s211 = scalar_lea.vmem [#allocation6], %s210
    %v212 = vld [vmem:[%s211] sm:$0x1]
    %s213 = sld [smem:[#allocation2 + $0xc]]
    %s214 = scalar_lea.vmem [#allocation6], %s213
    %v215 = vld [vmem:[%s214] sm:$0x1]
    %s216 = sld [smem:[#allocation2 + $0xd]]
    %s217 = scalar_lea.vmem [#allocation6], %s216
    %v218 = vld [vmem:[%s217] sm:$0x1]
    %s219 = sld [smem:[#allocation2 + $0xe]]
    %s220 = scalar_lea.vmem [#allocation6], %s219
    %v221 = vld [vmem:[%s220] sm:$0x1]
    %s222 = sld [smem:[#allocation2 + $0xf]]
    %s223 = scalar_lea.vmem [#allocation6], %s222
    %v224 = vld [vmem:[%s223] sm:$0x1]
    %v226 = vrot.slane %v206, 7
    %v229 = vrot.slane %v209, 6
    %v232 = vrot.slane %v212, 5
    %v235 = vrot.slane %v215, 4
    %v238 = vrot.slane %v218, 3
    %v241 = vrot.slane %v221, 2
    %v244 = vrot.slane %v224, 1
    %v246 = vsel %vm99, %v203, %v226
    %v247 = vsel %vm101, %v246, %v229
    %v248 = vsel %vm103, %v247, %v232
    %v249 = vsel %vm105, %v248, %v235
    %v250 = vsel %vm107, %v249, %v238
    %v251 = vsel %vm109, %v250, %v241
    %v252 = vsel %vm111, %v251, %v244
    %253 = vmatprep.subr.mxu0 0.0
    %254 = vmatpush1.msra.mxu0 %v128
    %255 = vmatprep.subr.mxu0 0.0
    %256 = vmatpush1.msra.mxu0 %v127
    %257 = vmatprep.subr.mxu0 0.0
    %258 = vmatpush1.msra.mxu0 %v126
    %259 = vmatprep.subr.mxu0 0.0
    %260 = vmatpush1.msra.mxu0 %v125
    %261 = vmatprep.subr.mxu0 0.0
    %262 = vmatpush1.msra.mxu0 %v124
    %263 = vmatprep.subr.mxu0 0.0
    %264 = vmatpush1.msra.mxu0 %v123
    %265 = vmatprep.subr.mxu0 0.0
    %266 = vmatpush1.msra.mxu0 %v122
    %267 = vmatprep.subr.mxu0 0.0
    %268 = vmatpush1.msra.mxu0 %v121
    %269 = vmatprep.subr.mxu0 0.0
    %270 = vmatpush1.msra.mxu0 %v120
    %271 = vmatprep.subr.mxu0 0.0
    %272 = vmatpush1.msra.mxu0 %v119
    %273 = vmatprep.subr.mxu0 0.0
    %274 = vmatpush1.msra.mxu0 %v118
    %275 = vmatprep.subr.mxu0 0.0
    %276 = vmatpush1.msra.mxu0 %v117
    %277 = vmatprep.subr.mxu0 0.0
    %278 = vmatpush1.msra.mxu0 %v116
    %279 = vmatprep.subr.mxu0 0.0
    %280 = vmatpush1.msra.mxu0 %v115
    %281 = vmatprep.subr.mxu0 0.0
    %282 = vmatpush1.msra.mxu0 %v114
    %283 = vmatprep.subr.mxu0 0.0
    %284 = vmatpush1.msra.mxu0 %v113
    %285 = vmatprep.subr.mxu0 0.0
    %286 = vmatpush2.msra.mxu0 0.0
    %287 = vmatprep.subr.mxu0 0.0
    %288 = vmatpush2.msra.mxu0 0.0
    %289 = vmatprep.subr.mxu0 0.0
    %290 = vmatpush2.msra.mxu0 0.0
    %291 = vmatprep.subr.mxu0 0.0
    %292 = vmatpush2.msra.mxu0 0.0
    %293 = vmatprep.subr.mxu0 0.0
    %294 = vmatpush2.msra.mxu0 0.0
    %295 = vmatprep.subr.mxu0 0.0
    %296 = vmatpush2.msra.mxu0 0.0
    %297 = vmatprep.subr.mxu0 0.0
    %298 = vmatpush2.msra.mxu0 0.0
    %299 = vmatprep.subr.mxu0 0.0
    %300 = vmatpush2.msra.mxu0 0.0
    %301 = vmatprep.subr.mxu0 0.0
    %302 = vmatpush2.msra.mxu0 0.0
    %303 = vmatprep.subr.mxu0 0.0
    %304 = vmatpush2.msra.mxu0 0.0
    %305 = vmatprep.subr.mxu0 0.0
    %306 = vmatpush2.msra.mxu0 0.0
    %307 = vmatprep.subr.mxu0 0.0
    %308 = vmatpush2.msra.mxu0 0.0
    %309 = vmatprep.subr.mxu0 0.0
    %310 = vmatpush2.msra.mxu0 0.0
    %311 = vmatprep.subr.mxu0 0.0
    %312 = vmatpush2.msra.mxu0 0.0
    %313 = vmatprep.subr.mxu0 0.0
    %314 = vmatpush2.msra.mxu0 0.0
    %315 = vmatprep.subr.mxu0 0.0
    %316 = vmatpush2.msra.mxu0 0.0
    %317 = vmatprep.mubr.f32.mxu0 0.0
    %318 = vmatmul.mubr.f32.gmra.mxu0 %v200
    %v319 = vpop.f32.mrf.mxu0
    %v320 = vadd.f32 0.0, %v319
    %v321 = vpop.f32.mrf.mxu0
    %322 = vdwg.mxu0
    %v323 = vadd.f32 %v252, %v320
    %v324 = vtanh.pop %v323
    %s325 = sld [smem:[#allocation2 + $0x10]]
    %s326 = scalar_lea.vmem [#allocation6], %s325
    %v327 = vld [vmem:[%s326] sm:$0x1]
    %s328 = sld [smem:[#allocation2 + $0x11]]
    %s329 = scalar_lea.vmem [#allocation6], %s328
    %v330 = vld [vmem:[%s329] sm:$0x1]
    %s331 = sld [smem:[#allocation2 + $0x12]]
    %s332 = scalar_lea.vmem [#allocation6], %s331
    %v333 = vld [vmem:[%s332] sm:$0x1]
    %s334 = sld [smem:[#allocation2 + $0x13]]
    %s335 = scalar_lea.vmem [#allocation6], %s334
    %v336 = vld [vmem:[%s335] sm:$0x1]
    %s337 = sld [smem:[#allocation2 + $0x14]]
    %s338 = scalar_lea.vmem [#allocation6], %s337
    %v339 = vld [vmem:[%s338] sm:$0x1]
    %s340 = sld [smem:[#allocation2 + $0x15]]
    %s341 = scalar_lea.vmem [#allocation6], %s340
    %v342 = vld [vmem:[%s341] sm:$0x1]
    %s343 = sld [smem:[#allocation2 + $0x16]]
    %s344 = scalar_lea.vmem [#allocation6], %s343
    %v345 = vld [vmem:[%s344] sm:$0x1]
    %s346 = sld [smem:[#allocation2 + $0x17]]
    %s347 = scalar_lea.vmem [#allocation6], %s346
    %v348 = vld [vmem:[%s347] sm:$0x1]
    %v350 = vrot.slane %v330, 7
    %v353 = vrot.slane %v333, 6
    %v356 = vrot.slane %v336, 5
    %v359 = vrot.slane %v339, 4
    %v362 = vrot.slane %v342, 3
    %v365 = vrot.slane %v345, 2
    %v368 = vrot.slane %v348, 1
    %v370 = vsel %vm99, %v327, %v350
    %v371 = vsel %vm101, %v370, %v353
    %v372 = vsel %vm103, %v371, %v356
    %v373 = vsel %vm105, %v372, %v359
    %v374 = vsel %vm107, %v373, %v362
    %v375 = vsel %vm109, %v374, %v365
    %v376 = vsel %vm111, %v375, %v368
    %377 = vmatprep.subr.mxu0 0.0
    %378 = vmatpush1.msra.mxu0 %v128
    %379 = vmatprep.subr.mxu0 0.0
    %380 = vmatpush1.msra.mxu0 %v127
    %381 = vmatprep.subr.mxu0 0.0
    %382 = vmatpush1.msra.mxu0 %v126
    %383 = vmatprep.subr.mxu0 0.0
    %384 = vmatpush1.msra.mxu0 %v125
    %385 = vmatprep.subr.mxu0 0.0
    %386 = vmatpush1.msra.mxu0 %v124
    %387 = vmatprep.subr.mxu0 0.0
    %388 = vmatpush1.msra.mxu0 %v123
    %389 = vmatprep.subr.mxu0 0.0
    %390 = vmatpush1.msra.mxu0 %v122
    %391 = vmatprep.subr.mxu0 0.0
    %392 = vmatpush1.msra.mxu0 %v121
    %393 = vmatprep.subr.mxu0 0.0
    %394 = vmatpush1.msra.mxu0 %v120
    %395 = vmatprep.subr.mxu0 0.0
    %396 = vmatpush1.msra.mxu0 %v119
    %397 = vmatprep.subr.mxu0 0.0
    %398 = vmatpush1.msra.mxu0 %v118
    %399 = vmatprep.subr.mxu0 0.0
    %400 = vmatpush1.msra.mxu0 %v117
    %401 = vmatprep.subr.mxu0 0.0
    %402 = vmatpush1.msra.mxu0 %v116
    %403 = vmatprep.subr.mxu0 0.0
    %404 = vmatpush1.msra.mxu0 %v115
    %405 = vmatprep.subr.mxu0 0.0
    %406 = vmatpush1.msra.mxu0 %v114
    %407 = vmatprep.subr.mxu0 0.0
    %408 = vmatpush1.msra.mxu0 %v113
    %409 = vmatprep.subr.mxu0 0.0
    %410 = vmatpush2.msra.mxu0 0.0
    %411 = vmatprep.subr.mxu0 0.0
    %412 = vmatpush2.msra.mxu0 0.0
    %413 = vmatprep.subr.mxu0 0.0
    %414 = vmatpush2.msra.mxu0 0.0
    %415 = vmatprep.subr.mxu0 0.0
    %416 = vmatpush2.msra.mxu0 0.0
    %417 = vmatprep.subr.mxu0 0.0
    %418 = vmatpush2.msra.mxu0 0.0
    %419 = vmatprep.subr.mxu0 0.0
    %420 = vmatpush2.msra.mxu0 0.0
    %421 = vmatprep.subr.mxu0 0.0
    %422 = vmatpush2.msra.mxu0 0.0
    %423 = vmatprep.subr.mxu0 0.0
    %424 = vmatpush2.msra.mxu0 0.0
    %425 = vmatprep.subr.mxu0 0.0
    %426 = vmatpush2.msra.mxu0 0.0
    %427 = vmatprep.subr.mxu0 0.0
    %428 = vmatpush2.msra.mxu0 0.0
    %429 = vmatprep.subr.mxu0 0.0
    %430 = vmatpush2.msra.mxu0 0.0
    %431 = vmatprep.subr.mxu0 0.0
    %432 = vmatpush2.msra.mxu0 0.0
    %433 = vmatprep.subr.mxu0 0.0
    %434 = vmatpush2.msra.mxu0 0.0
    %435 = vmatprep.subr.mxu0 0.0
    %436 = vmatpush2.msra.mxu0 0.0
    %437 = vmatprep.subr.mxu0 0.0
    %438 = vmatpush2.msra.mxu0 0.0
    %439 = vmatprep.subr.mxu0 0.0
    %440 = vmatpush2.msra.mxu0 0.0
    %441 = vmatprep.mubr.f32.mxu0 0.0
    %442 = vmatmul.mubr.f32.gmra.mxu0 %v324
    %v443 = vpop.f32.mrf.mxu0
    %v444 = vadd.f32 0.0, %v443
    %v445 = vpop.f32.mrf.mxu0
    %446 = vdwg.mxu0
    %v447 = vadd.f32 %v376, %v444
    %v448 = vtanh.pop %v447
    %s449 = sld [smem:[#allocation2 + $0x18]]
    %s450 = scalar_lea.vmem [#allocation6], %s449
    %v451 = vld [vmem:[%s450] sm:$0x1]
    %s452 = sld [smem:[#allocation2 + $0x19]]
    %s453 = scalar_lea.vmem [#allocation6], %s452
    %v454 = vld [vmem:[%s453] sm:$0x1]
    %s455 = sld [smem:[#allocation2 + $0x1a]]
    %s456 = scalar_lea.vmem [#allocation6], %s455
    %v457 = vld [vmem:[%s456] sm:$0x1]
    %s458 = sld [smem:[#allocation2 + $0x1b]]
    %s459 = scalar_lea.vmem [#allocation6], %s458
    %v460 = vld [vmem:[%s459] sm:$0x1]
    %s461 = sld [smem:[#allocation2 + $0x1c]]
    %s462 = scalar_lea.vmem [#allocation6], %s461
    %v463 = vld [vmem:[%s462] sm:$0x1]
    %s464 = sld [smem:[#allocation2 + $0x1d]]
    %s465 = scalar_lea.vmem [#allocation6], %s464
    %v466 = vld [vmem:[%s465] sm:$0x1]
    %s467 = sld [smem:[#allocation2 + $0x1e]]
    %s468 = scalar_lea.vmem [#allocation6], %s467
    %v469 = vld [vmem:[%s468] sm:$0x1]
    %s470 = sld [smem:[#allocation2 + $0x1f]]
    %s471 = scalar_lea.vmem [#allocation6], %s470
    %v472 = vld [vmem:[%s471] sm:$0x1]
    %v474 = vrot.slane %v454, 7
    %v477 = vrot.slane %v457, 6
    %v480 = vrot.slane %v460, 5
    %v483 = vrot.slane %v463, 4
    %v486 = vrot.slane %v466, 3
    %v489 = vrot.slane %v469, 2
    %v492 = vrot.slane %v472, 1
    %v494 = vsel %vm99, %v451, %v474
    %v495 = vsel %vm101, %v494, %v477
    %v496 = vsel %vm103, %v495, %v480
    %v497 = vsel %vm105, %v496, %v483
    %v498 = vsel %vm107, %v497, %v486
    %v499 = vsel %vm109, %v498, %v489
    %v500 = vsel %vm111, %v499, %v492
    %501 = vmatprep.subr.mxu0 0.0
    %502 = vmatpush1.msra.mxu0 %v128
    %503 = vmatprep.subr.mxu0 0.0
    %504 = vmatpush1.msra.mxu0 %v127
    %505 = vmatprep.subr.mxu0 0.0
    %506 = vmatpush1.msra.mxu0 %v126
    %507 = vmatprep.subr.mxu0 0.0
    %508 = vmatpush1.msra.mxu0 %v125
    %509 = vmatprep.subr.mxu0 0.0
    %510 = vmatpush1.msra.mxu0 %v124
    %511 = vmatprep.subr.mxu0 0.0
    %512 = vmatpush1.msra.mxu0 %v123
    %513 = vmatprep.subr.mxu0 0.0
    %514 = vmatpush1.msra.mxu0 %v122
    %515 = vmatprep.subr.mxu0 0.0
    %516 = vmatpush1.msra.mxu0 %v121
    %517 = vmatprep.subr.mxu0 0.0
    %518 = vmatpush1.msra.mxu0 %v120
    %519 = vmatprep.subr.mxu0 0.0
    %520 = vmatpush1.msra.mxu0 %v119
    %521 = vmatprep.subr.mxu0 0.0
    %522 = vmatpush1.msra.mxu0 %v118
    %523 = vmatprep.subr.mxu0 0.0
    %524 = vmatpush1.msra.mxu0 %v117
    %525 = vmatprep.subr.mxu0 0.0
    %526 = vmatpush1.msra.mxu0 %v116
    %527 = vmatprep.subr.mxu0 0.0
    %528 = vmatpush1.msra.mxu0 %v115
    %529 = vmatprep.subr.mxu0 0.0
    %530 = vmatpush1.msra.mxu0 %v114
    %531 = vmatprep.subr.mxu0 0.0
    %532 = vmatpush1.msra.mxu0 %v113
    %533 = vmatprep.subr.mxu0 0.0
    %534 = vmatpush2.msra.mxu0 0.0
    %535 = vmatprep.subr.mxu0 0.0
    %536 = vmatpush2.msra.mxu0 0.0
    %537 = vmatprep.subr.mxu0 0.0
    %538 = vmatpush2.msra.mxu0 0.0
    %539 = vmatprep.subr.mxu0 0.0
    %540 = vmatpush2.msra.mxu0 0.0
    %541 = vmatprep.subr.mxu0 0.0
    %542 = vmatpush2.msra.mxu0 0.0
    %543 = vmatprep.subr.mxu0 0.0
    %544 = vmatpush2.msra.mxu0 0.0
    %545 = vmatprep.subr.mxu0 0.0
    %546 = vmatpush2.msra.mxu0 0.0
    %547 = vmatprep.subr.mxu0 0.0
    %548 = vmatpush2.msra.mxu0 0.0
    %549 = vmatprep.subr.mxu0 0.0
    %550 = vmatpush2.msra.mxu0 0.0
    %551 = vmatprep.subr.mxu0 0.0
    %552 = vmatpush2.msra.mxu0 0.0
    %553 = vmatprep.subr.mxu0 0.0
    %554 = vmatpush2.msra.mxu0 0.0
    %555 = vmatprep.subr.mxu0 0.0
    %556 = vmatpush2.msra.mxu0 0.0
    %557 = vmatprep.subr.mxu0 0.0
    %558 = vmatpush2.msra.mxu0 0.0
    %559 = vmatprep.subr.mxu0 0.0
    %560 = vmatpush2.msra.mxu0 0.0
    %561 = vmatprep.subr.mxu0 0.0
    %562 = vmatpush2.msra.mxu0 0.0
    %563 = vmatprep.subr.mxu0 0.0
    %564 = vmatpush2.msra.mxu0 0.0
    %565 = vmatprep.mubr.f32.mxu0 0.0
    %566 = vmatmul.mubr.f32.gmra.mxu0 %v448
    %v567 = vpop.f32.mrf.mxu0
    %v568 = vadd.f32 0.0, %v567
    %v569 = vpop.f32.mrf.mxu0
    %570 = vdwg.mxu0
    %v571 = vadd.f32 %v500, %v568
    %v572 = vtanh.pop %v571
    %s573 = sld [smem:[#allocation2 + $0x20]]
    %s574 = scalar_lea.vmem [#allocation6], %s573
    %v575 = vld [vmem:[%s574] sm:$0x1]
    %s576 = sld [smem:[#allocation2 + $0x21]]
    %s577 = scalar_lea.vmem [#allocation6], %s576
    %v578 = vld [vmem:[%s577] sm:$0x1]
    %s579 = sld [smem:[#allocation2 + $0x22]]
    %s580 = scalar_lea.vmem [#allocation6], %s579
    %v581 = vld [vmem:[%s580] sm:$0x1]
    %s582 = sld [smem:[#allocation2 + $0x23]]
    %s583 = scalar_lea.vmem [#allocation6], %s582
    %v584 = vld [vmem:[%s583] sm:$0x1]
    %s585 = sld [smem:[#allocation2 + $0x24]]
    %s586 = scalar_lea.vmem [#allocation6], %s585
    %v587 = vld [vmem:[%s586] sm:$0x1]
    %s588 = sld [smem:[#allocation2 + $0x25]]
    %s589 = scalar_lea.vmem [#allocation6], %s588
    %v590 = vld [vmem:[%s589] sm:$0x1]
    %s591 = sld [smem:[#allocation2 + $0x26]]
    %s592 = scalar_lea.vmem [#allocation6], %s591
    %v593 = vld [vmem:[%s592] sm:$0x1]
    %s594 = sld [smem:[#allocation2 + $0x27]]
    %s595 = scalar_lea.vmem [#allocation6], %s594
    %v596 = vld [vmem:[%s595] sm:$0x1]
    %v598 = vrot.slane %v578, 7
    %v601 = vrot.slane %v581, 6
    %v604 = vrot.slane %v584, 5
    %v607 = vrot.slane %v587, 4
    %v610 = vrot.slane %v590, 3
    %v613 = vrot.slane %v593, 2
    %v616 = vrot.slane %v596, 1
    %v618 = vsel %vm99, %v575, %v598
    %v619 = vsel %vm101, %v618, %v601
    %v620 = vsel %vm103, %v619, %v604
    %v621 = vsel %vm105, %v620, %v607
    %v622 = vsel %vm107, %v621, %v610
    %v623 = vsel %vm109, %v622, %v613
    %v624 = vsel %vm111, %v623, %v616
    %625 = vmatprep.subr.mxu0 0.0
    %626 = vmatpush1.msra.mxu0 %v128
    %627 = vmatprep.subr.mxu0 0.0
    %628 = vmatpush1.msra.mxu0 %v127
    %629 = vmatprep.subr.mxu0 0.0
    %630 = vmatpush1.msra.mxu0 %v126
    %631 = vmatprep.subr.mxu0 0.0
    %632 = vmatpush1.msra.mxu0 %v125
    %633 = vmatprep.subr.mxu0 0.0
    %634 = vmatpush1.msra.mxu0 %v124
    %635 = vmatprep.subr.mxu0 0.0
    %636 = vmatpush1.msra.mxu0 %v123
    %637 = vmatprep.subr.mxu0 0.0
    %638 = vmatpush1.msra.mxu0 %v122
    %639 = vmatprep.subr.mxu0 0.0
    %640 = vmatpush1.msra.mxu0 %v121
    %641 = vmatprep.subr.mxu0 0.0
    %642 = vmatpush1.msra.mxu0 %v120
    %643 = vmatprep.subr.mxu0 0.0
    %644 = vmatpush1.msra.mxu0 %v119
    %645 = vmatprep.subr.mxu0 0.0
    %646 = vmatpush1.msra.mxu0 %v118
    %647 = vmatprep.subr.mxu0 0.0
    %648 = vmatpush1.msra.mxu0 %v117
    %649 = vmatprep.subr.mxu0 0.0
    %650 = vmatpush1.msra.mxu0 %v116
    %651 = vmatprep.subr.mxu0 0.0
    %652 = vmatpush1.msra.mxu0 %v115
    %653 = vmatprep.subr.mxu0 0.0
    %654 = vmatpush1.msra.mxu0 %v114
    %655 = vmatprep.subr.mxu0 0.0
    %656 = vmatpush1.msra.mxu0 %v113
    %657 = vmatprep.subr.mxu0 0.0
    %658 = vmatpush2.msra.mxu0 0.0
    %659 = vmatprep.subr.mxu0 0.0
    %660 = vmatpush2.msra.mxu0 0.0
    %661 = vmatprep.subr.mxu0 0.0
    %662 = vmatpush2.msra.mxu0 0.0
    %663 = vmatprep.subr.mxu0 0.0
    %664 = vmatpush2.msra.mxu0 0.0
    %665 = vmatprep.subr.mxu0 0.0
    %666 = vmatpush2.msra.mxu0 0.0
    %667 = vmatprep.subr.mxu0 0.0
    %668 = vmatpush2.msra.mxu0 0.0
    %669 = vmatprep.subr.mxu0 0.0
    %670 = vmatpush2.msra.mxu0 0.0
    %671 = vmatprep.subr.mxu0 0.0
    %672 = vmatpush2.msra.mxu0 0.0
    %673 = vmatprep.subr.mxu0 0.0
    %674 = vmatpush2.msra.mxu0 0.0
    %675 = vmatprep.subr.mxu0 0.0
    %676 = vmatpush2.msra.mxu0 0.0
    %677 = vmatprep.subr.mxu0 0.0
    %678 = vmatpush2.msra.mxu0 0.0
    %679 = vmatprep.subr.mxu0 0.0
    %680 = vmatpush2.msra.mxu0 0.0
    %681 = vmatprep.subr.mxu0 0.0
    %682 = vmatpush2.msra.mxu0 0.0
    %683 = vmatprep.subr.mxu0 0.0
    %684 = vmatpush2.msra.mxu0 0.0
    %685 = vmatprep.subr.mxu0 0.0
    %686 = vmatpush2.msra.mxu0 0.0
    %687 = vmatprep.subr.mxu0 0.0
    %688 = vmatpush2.msra.mxu0 0.0
    %689 = vmatprep.mubr.f32.mxu0 0.0
    %690 = vmatmul.mubr.f32.gmra.mxu0 %v572
    %v691 = vpop.f32.mrf.mxu0
    %v692 = vadd.f32 0.0, %v691
    %v693 = vpop.f32.mrf.mxu0
    %694 = vdwg.mxu0
    %v695 = vadd.f32 %v624, %v692
    %v696 = vtanh.pop %v695
    %s697 = sld [smem:[#allocation2 + $0x28]]
    %s698 = scalar_lea.vmem [#allocation6], %s697
    %v699 = vld [vmem:[%s698] sm:$0x1]
    %s700 = sld [smem:[#allocation2 + $0x29]]
    %s701 = scalar_lea.vmem [#allocation6], %s700
    %v702 = vld [vmem:[%s701] sm:$0x1]
    %s703 = sld [smem:[#allocation2 + $0x2a]]
    %s704 = scalar_lea.vmem [#allocation6], %s703
    %v705 = vld [vmem:[%s704] sm:$0x1]
    %s706 = sld [smem:[#allocation2 + $0x2b]]
    %s707 = scalar_lea.vmem [#allocation6], %s706
    %v708 = vld [vmem:[%s707] sm:$0x1]
    %s709 = sld [smem:[#allocation2 + $0x2c]]
    %s710 = scalar_lea.vmem [#allocation6], %s709
    %v711 = vld [vmem:[%s710] sm:$0x1]
    %s712 = sld [smem:[#allocation2 + $0x2d]]
    %s713 = scalar_lea.vmem [#allocation6], %s712
    %v714 = vld [vmem:[%s713] sm:$0x1]
    %s715 = sld [smem:[#allocation2 + $0x2e]]
    %s716 = scalar_lea.vmem [#allocation6], %s715
    %v717 = vld [vmem:[%s716] sm:$0x1]
    %s718 = sld [smem:[#allocation2 + $0x2f]]
    %s719 = scalar_lea.vmem [#allocation6], %s718
    %v720 = vld [vmem:[%s719] sm:$0x1]
    %v722 = vrot.slane %v702, 7
    %v725 = vrot.slane %v705, 6
    %v728 = vrot.slane %v708, 5
    %v731 = vrot.slane %v711, 4
    %v734 = vrot.slane %v714, 3
    %v737 = vrot.slane %v717, 2
    %v740 = vrot.slane %v720, 1
    %v742 = vsel %vm99, %v699, %v722
    %v743 = vsel %vm101, %v742, %v725
    %v744 = vsel %vm103, %v743, %v728
    %v745 = vsel %vm105, %v744, %v731
    %v746 = vsel %vm107, %v745, %v734
    %v747 = vsel %vm109, %v746, %v737
    %v748 = vsel %vm111, %v747, %v740
    %749 = vmatprep.subr.mxu0 0.0
    %750 = vmatpush1.msra.mxu0 %v128
    %751 = vmatprep.subr.mxu0 0.0
    %752 = vmatpush1.msra.mxu0 %v127
    %753 = vmatprep.subr.mxu0 0.0
    %754 = vmatpush1.msra.mxu0 %v126
    %755 = vmatprep.subr.mxu0 0.0
    %756 = vmatpush1.msra.mxu0 %v125
    %757 = vmatprep.subr.mxu0 0.0
    %758 = vmatpush1.msra.mxu0 %v124
    %759 = vmatprep.subr.mxu0 0.0
    %760 = vmatpush1.msra.mxu0 %v123
    %761 = vmatprep.subr.mxu0 0.0
    %762 = vmatpush1.msra.mxu0 %v122
    %763 = vmatprep.subr.mxu0 0.0
    %764 = vmatpush1.msra.mxu0 %v121
    %765 = vmatprep.subr.mxu0 0.0
    %766 = vmatpush1.msra.mxu0 %v120
    %767 = vmatprep.subr.mxu0 0.0
    %768 = vmatpush1.msra.mxu0 %v119
    %769 = vmatprep.subr.mxu0 0.0
    %770 = vmatpush1.msra.mxu0 %v118
    %771 = vmatprep.subr.mxu0 0.0
    %772 = vmatpush1.msra.mxu0 %v117
    %773 = vmatprep.subr.mxu0 0.0
    %774 = vmatpush1.msra.mxu0 %v116
    %775 = vmatprep.subr.mxu0 0.0
    %776 = vmatpush1.msra.mxu0 %v115
    %777 = vmatprep.subr.mxu0 0.0
    %778 = vmatpush1.msra.mxu0 %v114
    %779 = vmatprep.subr.mxu0 0.0
    %780 = vmatpush1.msra.mxu0 %v113
    %781 = vmatprep.subr.mxu0 0.0
    %782 = vmatpush2.msra.mxu0 0.0
    %783 = vmatprep.subr.mxu0 0.0
    %784 = vmatpush2.msra.mxu0 0.0
    %785 = vmatprep.subr.mxu0 0.0
    %786 = vmatpush2.msra.mxu0 0.0
    %787 = vmatprep.subr.mxu0 0.0
    %788 = vmatpush2.msra.mxu0 0.0
    %789 = vmatprep.subr.mxu0 0.0
    %790 = vmatpush2.msra.mxu0 0.0
    %791 = vmatprep.subr.mxu0 0.0
    %792 = vmatpush2.msra.mxu0 0.0
    %793 = vmatprep.subr.mxu0 0.0
    %794 = vmatpush2.msra.mxu0 0.0
    %795 = vmatprep.subr.mxu0 0.0
    %796 = vmatpush2.msra.mxu0 0.0
    %797 = vmatprep.subr.mxu0 0.0
    %798 = vmatpush2.msra.mxu0 0.0
    %799 = vmatprep.subr.mxu0 0.0
    %800 = vmatpush2.msra.mxu0 0.0
    %801 = vmatprep.subr.mxu0 0.0
    %802 = vmatpush2.msra.mxu0 0.0
    %803 = vmatprep.subr.mxu0 0.0
    %804 = vmatpush2.msra.mxu0 0.0
    %805 = vmatprep.subr.mxu0 0.0
    %806 = vmatpush2.msra.mxu0 0.0
    %807 = vmatprep.subr.mxu0 0.0
    %808 = vmatpush2.msra.mxu0 0.0
    %809 = vmatprep.subr.mxu0 0.0
    %810 = vmatpush2.msra.mxu0 0.0
    %811 = vmatprep.subr.mxu0 0.0
    %812 = vmatpush2.msra.mxu0 0.0
    %813 = vmatprep.mubr.f32.mxu0 0.0
    %814 = vmatmul.mubr.f32.gmra.mxu0 %v696
    %v815 = vpop.f32.mrf.mxu0
    %v816 = vadd.f32 0.0, %v815
    %v817 = vpop.f32.mrf.mxu0
    %818 = vdwg.mxu0
    %v819 = vadd.f32 %v748, %v816
    %v820 = vtanh.pop %v819
    %s821 = sld [smem:[#allocation2 + $0x30]]
    %s822 = scalar_lea.vmem [#allocation6], %s821
    %v823 = vld [vmem:[%s822] sm:$0x1]
    %s824 = sld [smem:[#allocation2 + $0x31]]
    %s825 = scalar_lea.vmem [#allocation6], %s824
    %v826 = vld [vmem:[%s825] sm:$0x1]
    %s827 = sld [smem:[#allocation2 + $0x32]]
    %s828 = scalar_lea.vmem [#allocation6], %s827
    %v829 = vld [vmem:[%s828] sm:$0x1]
    %s830 = sld [smem:[#allocation2 + $0x33]]
    %s831 = scalar_lea.vmem [#allocation6], %s830
    %v832 = vld [vmem:[%s831] sm:$0x1]
    %s833 = sld [smem:[#allocation2 + $0x34]]
    %s834 = scalar_lea.vmem [#allocation6], %s833
    %v835 = vld [vmem:[%s834] sm:$0x1]
    %s836 = sld [smem:[#allocation2 + $0x35]]
    %s837 = scalar_lea.vmem [#allocation6], %s836
    %v838 = vld [vmem:[%s837] sm:$0x1]
    %s839 = sld [smem:[#allocation2 + $0x36]]
    %s840 = scalar_lea.vmem [#allocation6], %s839
    %v841 = vld [vmem:[%s840] sm:$0x1]
    %s842 = sld [smem:[#allocation2 + $0x37]]
    %s843 = scalar_lea.vmem [#allocation6], %s842
    %v844 = vld [vmem:[%s843] sm:$0x1]
    %v846 = vrot.slane %v826, 7
    %v849 = vrot.slane %v829, 6
    %v852 = vrot.slane %v832, 5
    %v855 = vrot.slane %v835, 4
    %v858 = vrot.slane %v838, 3
    %v861 = vrot.slane %v841, 2
    %v864 = vrot.slane %v844, 1
    %v866 = vsel %vm99, %v823, %v846
    %v867 = vsel %vm101, %v866, %v849
    %v868 = vsel %vm103, %v867, %v852
    %v869 = vsel %vm105, %v868, %v855
    %v870 = vsel %vm107, %v869, %v858
    %v871 = vsel %vm109, %v870, %v861
    %v872 = vsel %vm111, %v871, %v864
    %873 = vmatprep.subr.mxu0 0.0
    %874 = vmatpush1.msra.mxu0 %v128
    %875 = vmatprep.subr.mxu0 0.0
    %876 = vmatpush1.msra.mxu0 %v127
    %877 = vmatprep.subr.mxu0 0.0
    %878 = vmatpush1.msra.mxu0 %v126
    %879 = vmatprep.subr.mxu0 0.0
    %880 = vmatpush1.msra.mxu0 %v125
    %881 = vmatprep.subr.mxu0 0.0
    %882 = vmatpush1.msra.mxu0 %v124
    %883 = vmatprep.subr.mxu0 0.0
    %884 = vmatpush1.msra.mxu0 %v123
    %885 = vmatprep.subr.mxu0 0.0
    %886 = vmatpush1.msra.mxu0 %v122
    %887 = vmatprep.subr.mxu0 0.0
    %888 = vmatpush1.msra.mxu0 %v121
    %889 = vmatprep.subr.mxu0 0.0
    %890 = vmatpush1.msra.mxu0 %v120
    %891 = vmatprep.subr.mxu0 0.0
    %892 = vmatpush1.msra.mxu0 %v119
    %893 = vmatprep.subr.mxu0 0.0
    %894 = vmatpush1.msra.mxu0 %v118
    %895 = vmatprep.subr.mxu0 0.0
    %896 = vmatpush1.msra.mxu0 %v117
    %897 = vmatprep.subr.mxu0 0.0
    %898 = vmatpush1.msra.mxu0 %v116
    %899 = vmatprep.subr.mxu0 0.0
    %900 = vmatpush1.msra.mxu0 %v115
    %901 = vmatprep.subr.mxu0 0.0
    %902 = vmatpush1.msra.mxu0 %v114
    %903 = vmatprep.subr.mxu0 0.0
    %904 = vmatpush1.msra.mxu0 %v113
    %905 = vmatprep.subr.mxu0 0.0
    %906 = vmatpush2.msra.mxu0 0.0
    %907 = vmatprep.subr.mxu0 0.0
    %908 = vmatpush2.msra.mxu0 0.0
    %909 = vmatprep.subr.mxu0 0.0
    %910 = vmatpush2.msra.mxu0 0.0
    %911 = vmatprep.subr.mxu0 0.0
    %912 = vmatpush2.msra.mxu0 0.0
    %913 = vmatprep.subr.mxu0 0.0
    %914 = vmatpush2.msra.mxu0 0.0
    %915 = vmatprep.subr.mxu0 0.0
    %916 = vmatpush2.msra.mxu0 0.0
    %917 = vmatprep.subr.mxu0 0.0
    %918 = vmatpush2.msra.mxu0 0.0
    %919 = vmatprep.subr.mxu0 0.0
    %920 = vmatpush2.msra.mxu0 0.0
    %921 = vmatprep.subr.mxu0 0.0
    %922 = vmatpush2.msra.mxu0 0.0
    %923 = vmatprep.subr.mxu0 0.0
    %924 = vmatpush2.msra.mxu0 0.0
    %925 = vmatprep.subr.mxu0 0.0
    %926 = vmatpush2.msra.mxu0 0.0
    %927 = vmatprep.subr.mxu0 0.0
    %928 = vmatpush2.msra.mxu0 0.0
    %929 = vmatprep.subr.mxu0 0.0
    %930 = vmatpush2.msra.mxu0 0.0
    %931 = vmatprep.subr.mxu0 0.0
    %932 = vmatpush2.msra.mxu0 0.0
    %933 = vmatprep.subr.mxu0 0.0
    %934 = vmatpush2.msra.mxu0 0.0
    %935 = vmatprep.subr.mxu0 0.0
    %936 = vmatpush2.msra.mxu0 0.0
    %937 = vmatprep.mubr.f32.mxu0 0.0
    %938 = vmatmul.mubr.f32.gmra.mxu0 %v820
    %v939 = vpop.f32.mrf.mxu0
    %v940 = vadd.f32 0.0, %v939
    %v941 = vpop.f32.mrf.mxu0
    %942 = vdwg.mxu0
    %v943 = vadd.f32 %v872, %v940
    %v944 = vtanh.pop %v943
    %s945 = sld [smem:[#allocation2 + $0x38]]
    %s946 = scalar_lea.vmem [#allocation6], %s945
    %v947 = vld [vmem:[%s946] sm:$0x1]
    %s948 = sld [smem:[#allocation2 + $0x39]]
    %s949 = scalar_lea.vmem [#allocation6], %s948
    %v950 = vld [vmem:[%s949] sm:$0x1]
    %s951 = sld [smem:[#allocation2 + $0x3a]]
    %s952 = scalar_lea.vmem [#allocation6], %s951
    %v953 = vld [vmem:[%s952] sm:$0x1]
    %s954 = sld [smem:[#allocation2 + $0x3b]]
    %s955 = scalar_lea.vmem [#allocation6], %s954
    %v956 = vld [vmem:[%s955] sm:$0x1]
    %s957 = sld [smem:[#allocation2 + $0x3c]]
    %s958 = scalar_lea.vmem [#allocation6], %s957
    %v959 = vld [vmem:[%s958] sm:$0x1]
    %s960 = sld [smem:[#allocation2 + $0x3d]]
    %s961 = scalar_lea.vmem [#allocation6], %s960
    %v962 = vld [vmem:[%s961] sm:$0x1]
    %s963 = sld [smem:[#allocation2 + $0x3e]]
    %s964 = scalar_lea.vmem [#allocation6], %s963
    %v965 = vld [vmem:[%s964] sm:$0x1]
    %s966 = sld [smem:[#allocation2 + $0x3f]]
    %s967 = scalar_lea.vmem [#allocation6], %s966
    %v968 = vld [vmem:[%s967] sm:$0x1]
    %v970 = vrot.slane %v950, 7
    %v973 = vrot.slane %v953, 6
    %v976 = vrot.slane %v956, 5
    %v979 = vrot.slane %v959, 4
    %v982 = vrot.slane %v962, 3
    %v985 = vrot.slane %v965, 2
    %v988 = vrot.slane %v968, 1
    %v990 = vsel %vm99, %v947, %v970
    %v991 = vsel %vm101, %v990, %v973
    %v992 = vsel %vm103, %v991, %v976
    %v993 = vsel %vm105, %v992, %v979
    %v994 = vsel %vm107, %v993, %v982
    %v995 = vsel %vm109, %v994, %v985
    %v996 = vsel %vm111, %v995, %v988
    %997 = vmatprep.subr.mxu0 0.0
    %998 = vmatpush1.msra.mxu0 %v128
    %999 = vmatprep.subr.mxu0 0.0
    %1000 = vmatpush1.msra.mxu0 %v127
    %1001 = vmatprep.subr.mxu0 0.0
    %1002 = vmatpush1.msra.mxu0 %v126
    %1003 = vmatprep.subr.mxu0 0.0
    %1004 = vmatpush1.msra.mxu0 %v125
    %1005 = vmatprep.subr.mxu0 0.0
    %1006 = vmatpush1.msra.mxu0 %v124
    %1007 = vmatprep.subr.mxu0 0.0
    %1008 = vmatpush1.msra.mxu0 %v123
    %1009 = vmatprep.subr.mxu0 0.0
    %1010 = vmatpush1.msra.mxu0 %v122
    %1011 = vmatprep.subr.mxu0 0.0
    %1012 = vmatpush1.msra.mxu0 %v121
    %1013 = vmatprep.subr.mxu0 0.0
    %1014 = vmatpush1.msra.mxu0 %v120
    %1015 = vmatprep.subr.mxu0 0.0
    %1016 = vmatpush1.msra.mxu0 %v119
    %1017 = vmatprep.subr.mxu0 0.0
    %1018 = vmatpush1.msra.mxu0 %v118
    %1019 = vmatprep.subr.mxu0 0.0
    %1020 = vmatpush1.msra.mxu0 %v117
    %1021 = vmatprep.subr.mxu0 0.0
    %1022 = vmatpush1.msra.mxu0 %v116
    %1023 = vmatprep.subr.mxu0 0.0
    %1024 = vmatpush1.msra.mxu0 %v115
    %1025 = vmatprep.subr.mxu0 0.0
    %1026 = vmatpush1.msra.mxu0 %v114
    %1027 = vmatprep.subr.mxu0 0.0
    %1028 = vmatpush1.msra.mxu0 %v113
    %1029 = vmatprep.subr.mxu0 0.0
    %1030 = vmatpush2.msra.mxu0 0.0
    %1031 = vmatprep.subr.mxu0 0.0
    %1032 = vmatpush2.msra.mxu0 0.0
    %1033 = vmatprep.subr.mxu0 0.0
    %1034 = vmatpush2.msra.mxu0 0.0
    %1035 = vmatprep.subr.mxu0 0.0
    %1036 = vmatpush2.msra.mxu0 0.0
    %1037 = vmatprep.subr.mxu0 0.0
    %1038 = vmatpush2.msra.mxu0 0.0
    %1039 = vmatprep.subr.mxu0 0.0
    %1040 = vmatpush2.msra.mxu0 0.0
    %1041 = vmatprep.subr.mxu0 0.0
    %1042 = vmatpush2.msra.mxu0 0.0
    %1043 = vmatprep.subr.mxu0 0.0
    %1044 = vmatpush2.msra.mxu0 0.0
    %1045 = vmatprep.subr.mxu0 0.0
    %1046 = vmatpush2.msra.mxu0 0.0
    %1047 = vmatprep.subr.mxu0 0.0
    %1048 = vmatpush2.msra.mxu0 0.0
    %1049 = vmatprep.subr.mxu0 0.0
    %1050 = vmatpush2.msra.mxu0 0.0
    %1051 = vmatprep.subr.mxu0 0.0
    %1052 = vmatpush2.msra.mxu0 0.0
    %1053 = vmatprep.subr.mxu0 0.0
    %1054 = vmatpush2.msra.mxu0 0.0
    %1055 = vmatprep.subr.mxu0 0.0
    %1056 = vmatpush2.msra.mxu0 0.0
    %1057 = vmatprep.subr.mxu0 0.0
    %1058 = vmatpush2.msra.mxu0 0.0
    %1059 = vmatprep.subr.mxu0 0.0
    %1060 = vmatpush2.msra.mxu0 0.0
    %1061 = vmatprep.mubr.f32.mxu0 0.0
    %1062 = vmatmul.mubr.f32.gmra.mxu0 %v944
    %v1063 = vpop.f32.mrf.mxu0
    %v1064 = vadd.f32 0.0, %v1063
    %v1065 = vpop.f32.mrf.mxu0
    %1066 = vdwg.mxu0
    %v1067 = vadd.f32 %v996, %v1064
    %v1068 = vtanh.pop %v1067
    %1069 = vst [vmem:[#allocation9] sm:$0xff] %v1068
    // Predicated region
    $region26: #{tpu_custom_call.1} parent=1 // pred_check
      _
    $region27: #{tpu_custom_call.1} parent=1 // pred_check_branch
      %1071 = sbr.rel (0) target = $region29
    $region28: #{tpu_custom_call.1} parent=1 // pred_region
      %s1073 = ssub.s32 128, 128
      %1074 = vsyncadd [#allocation4], %s1073
      %s1076 = sshll.u32 [#allocation9], 4
      %s1077 = int_to_ptr.vmem [resolvable:$true] %s1076
      %1079 = dma.vmem_to_hbm [thread:$0]  %s1077, 128, %s3, [#allocation4]
    $region29: #{tpu_custom_call.1} parent=1 // pred_fallthru
      _
    // Predicated region
    $region30: #{tpu_custom_call.1} parent=1 // pred_check
      _
    $region31: #{tpu_custom_call.1} parent=1 // pred_check_branch
      %1081 = sbr.rel (0) target = $region33
    $region32: #{tpu_custom_call.1} parent=1 // pred_region
      %1082 = dma.done [#allocation4], 128
    $region33: #{tpu_custom_call.1} parent=1 // pred_fallthru
      _
    %1083 = vsyncpa [#allocation3], 1
    %1084 = vsyncpa [#allocation8], 1
    %1085 = vsyncpa [#allocation4], 1
    %1086 = vsyncpa [#allocation5], 1

</llo_original>
